<compile_context>
chip_gen: v7x
topology: tpu7x:2x2x1
jax: 0.10.0
libtpu: 0.0.40
codegen_flags: <defaults>
</compile_context>

<pallas_src>
import jax
import jax.numpy as jnp
from jax import lax
from jax.experimental import pallas as pl
from jax.experimental.pallas import tpu as pltpu

EPS = 1e-5      # nn.BatchNorm2d default eps
SLOPE = 0.2     # LeakyReLU negative slope


# ---------------------------------------------------------------------------
# Wrapper-side weight folding (cheap XLA, no activation inflation)
# ---------------------------------------------------------------------------
def build_wbig(w_oihw, w_in, w_out):
    """Fold a 4x4 / stride-2 / pad-1 conv along W into a dense matrix.

    Returns (KH * w_in * Cin, w_out * Cout) with
      row index = kh * (w_in*Cin) + w * Cin + c   (w = unpadded input column)
      col index = j * Cout + o                     (j = output column)
      entry     = weight[o, c, kh, kw] with kw = w + 1 - 2*j (0 if out of range).
    """
    cout, cin, kh_sz, kw_sz = w_oihw.shape
    w_k = jnp.transpose(w_oihw, (2, 3, 1, 0))              # (KH, KW, Cin, Cout)
    w_ids = jnp.arange(w_in)[:, None]
    j_ids = jnp.arange(w_out)[None, :]
    kw = w_ids + 1 - 2 * j_ids                               # (w_in, w_out)
    valid = (kw >= 0) & (kw < kw_sz)
    sel = w_k[:, jnp.clip(kw, 0, kw_sz - 1)]                  # (KH, w_in, w_out, Cin, Cout)
    sel = jnp.where(valid[None, :, :, None, None], sel, 0.0)
    sel = jnp.transpose(sel, (0, 1, 3, 2, 4))                 # (KH, w_in, Cin, w_out, Cout)
    return sel.reshape(kh_sz * w_in * cin, w_out * cout)


# ---------------------------------------------------------------------------
# Fused Pallas kernel (whole forward pass)
# ---------------------------------------------------------------------------
def make_kernel(n, h, w, nc, ndf):
    c2, c3, c4 = 2 * ndf, 4 * ndf, 8 * ndf
    h1, w1 = h // 2, w // 2
    h2, w2 = h1 // 2, w1 // 2
    h3, w3 = h2 // 2, w2 // 2
    h4, w4 = h3 // 2, w3 // 2

    def leaky(v):
        return jnp.where(v >= 0, v, SLOPE * v)

    def kernel(x_ref, wb1_ref, wb2_ref, wb3_ref, wb4_ref,
               g2_ref, b2_ref, g3_ref, b3_ref, g4_ref, b4_ref,
               wc_ref, out_ref):

        def conv(rows, w_ref, h_out):
            # rows: padded-H ordered list of (n, W_in*Cin) bf16 blocks.
            # One MXU matmul per output row: the 4 kh taps are 4 consecutive
            # rows concatenated along lanes; kw taps + stride-2 W gather are
            # already folded into w_ref (block-banded weight matrix).
            wmat = w_ref[...]
            return [
                jnp.dot(jnp.concatenate(rows[2 * i:2 * i + 4], axis=1), wmat,
                        preferred_element_type=jnp.float32)
                for i in range(h_out)
            ]

        def pad_rows(ys):
            # H padding of 1 (zero rows) + cast to bf16 for the next MXU matmul.
            yb = [v.astype(jnp.bfloat16) for v in ys]
            z = jnp.zeros(yb[0].shape, jnp.bfloat16)
            return [z] + yb + [z]

        def batchnorm(ys, g_ref, b_ref, cout, wout):
            # Training-mode BN (biased batch stats over N*H_out*W_out), one pass:
            # sum / sum-of-squares, then per-channel reduction over the W_out lane
            # groups (lane period == cout) via cheap XLU lane rolls.
            lanes = ys[0].shape[1]                      # == wout * cout
            cnt = float(n * len(ys) * wout)
            s1 = jnp.zeros((1, lanes), jnp.float32)
            s2 = jnp.zeros((1, lanes), jnp.float32)
            for v in ys:
                s1 = s1 + jnp.sum(v, axis=0, keepdims=True)
                s2 = s2 + jnp.sum(v * v, axis=0, keepdims=True)
            shift = cout
            while shift < lanes:
                s1 = s1 + pltpu.roll(s1, shift, 1)
                s2 = s2 + pltpu.roll(s2, shift, 1)
                shift *= 2
            mean = s1 / cnt
            var = s2 / cnt - mean * mean                # E[y^2] - mean^2 (biased)
            scale = g_ref[...] * lax.rsqrt(var + EPS)
            offset = b_ref[...] - mean * scale
            return [v * scale + offset for v in ys]

        # ---- layer 1: nc -> ndf, conv + LeakyReLU (no BN) --------------------
        zero0 = jnp.zeros((n, w * nc), jnp.bfloat16)
        rows = [zero0] + [x_ref[r] for r in range(h)] + [zero0]
        y = [leaky(v) for v in conv(rows, wb1_ref, h1)]

        # ---- layer 2: ndf -> 2*ndf, conv + BN + LeakyReLU --------------------
        y = conv(pad_rows(y), wb2_ref, h2)
        y = [leaky(v) for v in batchnorm(y, g2_ref, b2_ref, c2, w2)]

        # ---- layer 3: 2*ndf -> 4*ndf -----------------------------------------
        y = conv(pad_rows(y), wb3_ref, h3)
        y = [leaky(v) for v in batchnorm(y, g3_ref, b3_ref, c3, w3)]

        # ---- layer 4: 4*ndf -> 8*ndf -----------------------------------------
        y = conv(pad_rows(y), wb4_ref, h4)
        y = [leaky(v) for v in batchnorm(y, g4_ref, b4_ref, c4, w4)]

        # ---- AdaptiveAvgPool2d(1): final map is 1x1 here, so pool == identity.
        # TODO(synk): generalize the final pooling if the conv stack does not
        # reduce the input to a 1x1 spatial map.
        pooled = y[0]                                   # (n, c4) f32

        # ---- classifier: 1x1 conv (no bias) + sigmoid, folded into out slab --
        logit = jnp.sum(pooled * wc_ref[...], axis=1, keepdims=True)   # (n, 1)
        cls = jax.nn.sigmoid(logit)
        out_ref[...] = jnp.concatenate(
            [pooled, jnp.broadcast_to(cls, (n, c4))], axis=1)          # (n, 2*c4)

    return kernel


def _vmem():
    return pl.BlockSpec(memory_space=pltpu.MemorySpace.VMEM)


# ---------------------------------------------------------------------------
# Forward wrapper (layout prep in XLA, single fused pallas_call)
# ---------------------------------------------------------------------------
def discriminator_forward(x_nchw, params):
    """Returns (classifier (N,), features (N, 8*ndf, 1, 1)) — matches PyTorch."""
    n, nc, h, w = x_nchw.shape
    ndf = params["w1"].shape[0]
    c1, c2, c3, c4 = ndf, 2 * ndf, 4 * ndf, 8 * ndf
    h1, w1 = h // 2, w // 2
    h2, w2 = h1 // 2, w1 // 2
    h3, w3 = h2 // 2, w2 // 2
    h4, w4 = h3 // 2, w3 // 2
    assert h4 == 1 and w4 == 1, "kernel assumes the conv stack reduces to a 1x1 map"

    # Layer-1 input layout: (H, N, W*C) — leading dim = image row (trivially
    # indexable in-kernel), lanes = (w, c) flattened.  bf16 MXU operand.
    x1 = jnp.transpose(x_nchw.astype(jnp.float32), (2, 0, 3, 1)).reshape(h, n, w * nc)
    x1 = x1.astype(jnp.bfloat16)

    # Block-banded folded conv weights (bf16 MXU operands).
    wb1 = build_wbig(params["w1"], w, w1).astype(jnp.bfloat16)    # (4*w*nc,   w1*c1)
    wb2 = build_wbig(params["w2"], w1, w2).astype(jnp.bfloat16)   # (4*w1*c1,  w2*c2)
    wb3 = build_wbig(params["w3"], w2, w3).astype(jnp.bfloat16)   # (4*w2*c2,  w3*c3)
    wb4 = build_wbig(params["w4"], w3, w4).astype(jnp.bfloat16)   # (4*w3*c3,  w4*c4)

    # BN affine params replicated across the W_out lane groups: lane j*C+o -> gamma[o].
    g2 = jnp.tile(params["g2"], w2).reshape(1, w2 * c2).astype(jnp.float32)
    b2 = jnp.tile(params["b2"], w2).reshape(1, w2 * c2).astype(jnp.float32)
    g3 = jnp.tile(params["g3"], w3).reshape(1, w3 * c3).astype(jnp.float32)
    b3 = jnp.tile(params["b3"], w3).reshape(1, w3 * c3).astype(jnp.float32)
    g4 = jnp.tile(params["g4"], w4).reshape(1, w4 * c4).astype(jnp.float32)
    b4 = jnp.tile(params["b4"], w4).reshape(1, w4 * c4).astype(jnp.float32)
    wc = params["wc"].reshape(1, c4).astype(jnp.float32)

    # Advisory cost estimate so XLA can schedule surrounding ops around the call.
    k1, k2, k3, k4 = 4 * w * nc, 4 * w1 * c1, 4 * w2 * c2, 4 * w3 * c3
    flops = 2 * n * (h1 * k1 * (w1 * c1) + h2 * k2 * (w2 * c2)
                     + h3 * k3 * (w3 * c3) + h4 * k4 * (w4 * c4) + c4)
    bytes_accessed = (2 * (x1.size + wb1.size + wb2.size + wb3.size + wb4.size)
                      + 4 * (g2.size + b2.size + g3.size + b3.size + g4.size + b4.size
                             + wc.size + n * 2 * c4))
    cost = pl.CostEstimate(flops=int(flops), transcendentals=int(n + 3 * c4),
                           bytes_accessed=int(bytes_accessed))

    out = pl.pallas_call(
        make_kernel(n, h, w, nc, ndf),
        out_shape=jax.ShapeDtypeStruct((n, 2 * c4), jnp.float32),
        in_specs=[_vmem()] * 12,
        out_specs=_vmem(),
        compiler_params=pltpu.CompilerParams(vmem_limit_bytes=32 * 1024 * 1024),
        cost_estimate=cost,
    )(x1, wb1, wb2, wb3, wb4, g2, b2, g3, b3, g4, b4, wc)

    classifier = out[:, c4]                              # sigmoid(1x1 conv), (N,)
    features = out[:, :c4].reshape(n, c4, 1, 1)          # AdaptiveAvgPool output
    return classifier, features


# ---------------------------------------------------------------------------
# Pure-JAX reference with the same bf16 operand quantization (correctness only)
# ---------------------------------------------------------------------------
def _ref_forward(x_nchw, params):
    f32, bf16 = jnp.float32, jnp.bfloat16

    def conv(x, w_):
        return lax.conv_general_dilated(
            x.astype(bf16), jnp.transpose(w_, (2, 3, 1, 0)).astype(bf16),
            (2, 2), ((1, 1), (1, 1)),
            dimension_numbers=("NHWC", "HWIO", "NHWC"),
            preferred_element_type=f32)

    def bn(x, g, b):
        m = jnp.mean(x, axis=(0, 1, 2), keepdims=True)
        v = jnp.mean(x * x, axis=(0, 1, 2), keepdims=True) - m * m
        return (x - m) * lax.rsqrt(v + EPS) * g + b

    def lrelu(x):
        return jnp.where(x >= 0, x, SLOPE * x)

    x = jnp.transpose(x_nchw, (0, 2, 3, 1)).astype(f32)
    hh = lrelu(conv(x, params["w1"]))
    hh = lrelu(bn(conv(hh, params["w2"]), params["g2"], params["b2"]))
    hh = lrelu(bn(conv(hh, params["w3"]), params["g3"], params["b3"]))
    hh = lrelu(bn(conv(hh, params["w4"]), params["g4"], params["b4"]))
    pooled = jnp.mean(hh, axis=(1, 2))                                # (N, C)
    logits = pooled @ jnp.transpose(params["wc"].reshape(1, -1))      # (N, 1)
    cls = jax.nn.sigmoid(logits).mean(axis=1)
    return cls, pooled[:, :, None, None]


# ---------------------------------------------------------------------------
# Main
# ---------------------------------------------------------------------------
if __name__ == "__main__":
    # Small, module-consistent config: scale_id=0 path, nc=4, ndf=16, 16x16 input.
    N, NC, H, W = 2, 4, 16, 16
    NDF = 16

    key = jax.random.PRNGKey(0)
    ks = jax.random.split(key, 12)
    params = {
        # Conv2d weights (Cout, Cin, 4, 4), bias=False — DCGAN-style 0.02*N(0,1)
        "w1": 0.02 * jax.random.normal(ks[0], (NDF,     NC,      4, 4), jnp.float32),
        "w2": 0.02 * jax.random.normal(ks[1], (NDF * 2, NDF,     4, 4), jnp.float32),
        "w3": 0.02 * jax.random.normal(ks[2], (NDF * 4, NDF * 2, 4, 4), jnp.float32),
        "w4": 0.02 * jax.random.normal(ks[3], (NDF * 8, NDF * 4, 4, 4), jnp.float32),
        # BatchNorm affine params (deterministic, non-trivial)
        "g2": 1.0 + 0.1 * jax.random.normal(ks[4], (NDF * 2,), jnp.float32),
        "b2": 0.1 * jax.random.normal(ks[5], (NDF * 2,), jnp.float32),
        "g3": 1.0 + 0.1 * jax.random.normal(ks[6], (NDF * 4,), jnp.float32),
        "b3": 0.1 * jax.random.normal(ks[7], (NDF * 4,), jnp.float32),
        "g4": 1.0 + 0.1 * jax.random.normal(ks[8], (NDF * 8,), jnp.float32),
        "b4": 0.1 * jax.random.normal(ks[9], (NDF * 8,), jnp.float32),
        # classifier 1x1 conv weight (1, 8*ndf, 1, 1), bias=False
        "wc": 0.02 * jax.random.normal(ks[10], (1, NDF * 8, 1, 1), jnp.float32),
    }

    x = jax.random.normal(ks[11], (N, NC, H, W), jnp.float32)      # NCHW like PyTorch

    fwd = jax.jit(discriminator_forward)
    classifier, features = fwd(x, params)
    jax.block_until_ready((classifier, features))

    # Sanity check vs. a pure-JAX reference that uses the same bf16 MXU-operand
    # quantization (f32 accumulation / BN / LeakyReLU).
    ref_cls, ref_feat = _ref_forward(x, params)
    assert classifier.shape == (N,) and features.shape == (N, NDF * 8, 1, 1)
    assert jnp.allclose(classifier, ref_cls, atol=1e-2, rtol=1e-2)
    assert jnp.allclose(features, ref_feat, atol=2e-2, rtol=2e-2)

    print("KERNEL_OK")
</pallas_src>

<mosaic_0001>
module attributes {stable_mosaic.version = 11 : i64} {
  func.func @kernel(%arg0: memref<16x2x64xbf16, #tpu.memory_space<vmem>>, %arg1: memref<256x128xbf16, #tpu.memory_space<vmem>>, %arg2: memref<512x128xbf16, #tpu.memory_space<vmem>>, %arg3: memref<512x128xbf16, #tpu.memory_space<vmem>>, %arg4: memref<512x128xbf16, #tpu.memory_space<vmem>>, %arg5: memref<1x128xf32, #tpu.memory_space<vmem>>, %arg6: memref<1x128xf32, #tpu.memory_space<vmem>>, %arg7: memref<1x128xf32, #tpu.memory_space<vmem>>, %arg8: memref<1x128xf32, #tpu.memory_space<vmem>>, %arg9: memref<1x128xf32, #tpu.memory_space<vmem>>, %arg10: memref<1x128xf32, #tpu.memory_space<vmem>>, %arg11: memref<1x128xf32, #tpu.memory_space<vmem>>, %arg12: memref<2x256xf32, #tpu.memory_space<vmem>>) attributes {dimension_semantics = [], scalar_prefetch = 0 : i64, scratch_operands = 0 : i64, tpu.core_type = #tpu.core_type<tc>} {
    %cst = arith.constant 0.000000e+00 : bf16
    %0 = vector.broadcast %cst : bf16 to vector<2x64xbf16>
    %c0 = arith.constant 0 : index
    %c0_0 = arith.constant 0 : index
    %c0_1 = arith.constant 0 : index
    %1 = vector.load %arg0[%c0, %c0_0, %c0_1] : memref<16x2x64xbf16, #tpu.memory_space<vmem>>, vector<1x2x64xbf16>
    %2 = vector.shape_cast %1 : vector<1x2x64xbf16> to vector<2x64xbf16>
    %c1 = arith.constant 1 : index
    %c0_2 = arith.constant 0 : index
    %c0_3 = arith.constant 0 : index
    %3 = vector.load %arg0[%c1, %c0_2, %c0_3] : memref<16x2x64xbf16, #tpu.memory_space<vmem>>, vector<1x2x64xbf16>
    %4 = vector.shape_cast %3 : vector<1x2x64xbf16> to vector<2x64xbf16>
    %c2 = arith.constant 2 : index
    %c0_4 = arith.constant 0 : index
    %c0_5 = arith.constant 0 : index
    %5 = vector.load %arg0[%c2, %c0_4, %c0_5] : memref<16x2x64xbf16, #tpu.memory_space<vmem>>, vector<1x2x64xbf16>
    %6 = vector.shape_cast %5 : vector<1x2x64xbf16> to vector<2x64xbf16>
    %c3 = arith.constant 3 : index
    %c0_6 = arith.constant 0 : index
    %c0_7 = arith.constant 0 : index
    %7 = vector.load %arg0[%c3, %c0_6, %c0_7] : memref<16x2x64xbf16, #tpu.memory_space<vmem>>, vector<1x2x64xbf16>
    %8 = vector.shape_cast %7 : vector<1x2x64xbf16> to vector<2x64xbf16>
    %c4 = arith.constant 4 : index
    %c0_8 = arith.constant 0 : index
    %c0_9 = arith.constant 0 : index
    %9 = vector.load %arg0[%c4, %c0_8, %c0_9] : memref<16x2x64xbf16, #tpu.memory_space<vmem>>, vector<1x2x64xbf16>
    %10 = vector.shape_cast %9 : vector<1x2x64xbf16> to vector<2x64xbf16>
    %c5 = arith.constant 5 : index
    %c0_10 = arith.constant 0 : index
    %c0_11 = arith.constant 0 : index
    %11 = vector.load %arg0[%c5, %c0_10, %c0_11] : memref<16x2x64xbf16, #tpu.memory_space<vmem>>, vector<1x2x64xbf16>
    %12 = vector.shape_cast %11 : vector<1x2x64xbf16> to vector<2x64xbf16>
    %c6 = arith.constant 6 : index
    %c0_12 = arith.constant 0 : index
    %c0_13 = arith.constant 0 : index
    %13 = vector.load %arg0[%c6, %c0_12, %c0_13] : memref<16x2x64xbf16, #tpu.memory_space<vmem>>, vector<1x2x64xbf16>
    %14 = vector.shape_cast %13 : vector<1x2x64xbf16> to vector<2x64xbf16>
    %c7 = arith.constant 7 : index
    %c0_14 = arith.constant 0 : index
    %c0_15 = arith.constant 0 : index
    %15 = vector.load %arg0[%c7, %c0_14, %c0_15] : memref<16x2x64xbf16, #tpu.memory_space<vmem>>, vector<1x2x64xbf16>
    %16 = vector.shape_cast %15 : vector<1x2x64xbf16> to vector<2x64xbf16>
    %c8 = arith.constant 8 : index
    %c0_16 = arith.constant 0 : index
    %c0_17 = arith.constant 0 : index
    %17 = vector.load %arg0[%c8, %c0_16, %c0_17] : memref<16x2x64xbf16, #tpu.memory_space<vmem>>, vector<1x2x64xbf16>
    %18 = vector.shape_cast %17 : vector<1x2x64xbf16> to vector<2x64xbf16>
    %c9 = arith.constant 9 : index
    %c0_18 = arith.constant 0 : index
    %c0_19 = arith.constant 0 : index
    %19 = vector.load %arg0[%c9, %c0_18, %c0_19] : memref<16x2x64xbf16, #tpu.memory_space<vmem>>, vector<1x2x64xbf16>
    %20 = vector.shape_cast %19 : vector<1x2x64xbf16> to vector<2x64xbf16>
    %c10 = arith.constant 10 : index
    %c0_20 = arith.constant 0 : index
    %c0_21 = arith.constant 0 : index
    %21 = vector.load %arg0[%c10, %c0_20, %c0_21] : memref<16x2x64xbf16, #tpu.memory_space<vmem>>, vector<1x2x64xbf16>
    %22 = vector.shape_cast %21 : vector<1x2x64xbf16> to vector<2x64xbf16>
    %c11 = arith.constant 11 : index
    %c0_22 = arith.constant 0 : index
    %c0_23 = arith.constant 0 : index
    %23 = vector.load %arg0[%c11, %c0_22, %c0_23] : memref<16x2x64xbf16, #tpu.memory_space<vmem>>, vector<1x2x64xbf16>
    %24 = vector.shape_cast %23 : vector<1x2x64xbf16> to vector<2x64xbf16>
    %c12 = arith.constant 12 : index
    %c0_24 = arith.constant 0 : index
    %c0_25 = arith.constant 0 : index
    %25 = vector.load %arg0[%c12, %c0_24, %c0_25] : memref<16x2x64xbf16, #tpu.memory_space<vmem>>, vector<1x2x64xbf16>
    %26 = vector.shape_cast %25 : vector<1x2x64xbf16> to vector<2x64xbf16>
    %c13 = arith.constant 13 : index
    %c0_26 = arith.constant 0 : index
    %c0_27 = arith.constant 0 : index
    %27 = vector.load %arg0[%c13, %c0_26, %c0_27] : memref<16x2x64xbf16, #tpu.memory_space<vmem>>, vector<1x2x64xbf16>
    %28 = vector.shape_cast %27 : vector<1x2x64xbf16> to vector<2x64xbf16>
    %c14 = arith.constant 14 : index
    %c0_28 = arith.constant 0 : index
    %c0_29 = arith.constant 0 : index
    %29 = vector.load %arg0[%c14, %c0_28, %c0_29] : memref<16x2x64xbf16, #tpu.memory_space<vmem>>, vector<1x2x64xbf16>
    %30 = vector.shape_cast %29 : vector<1x2x64xbf16> to vector<2x64xbf16>
    %c15 = arith.constant 15 : index
    %c0_30 = arith.constant 0 : index
    %c0_31 = arith.constant 0 : index
    %31 = vector.load %arg0[%c15, %c0_30, %c0_31] : memref<16x2x64xbf16, #tpu.memory_space<vmem>>, vector<1x2x64xbf16>
    %32 = vector.shape_cast %31 : vector<1x2x64xbf16> to vector<2x64xbf16>
    %c0_32 = arith.constant 0 : index
    %c0_33 = arith.constant 0 : index
    %33 = vector.load %arg1[%c0_32, %c0_33] : memref<256x128xbf16, #tpu.memory_space<vmem>>, vector<256x128xbf16>
    %34 = tpu.concatenate %0, %2, %4, %6 in 1 : vector<2x64xbf16>, vector<2x64xbf16>, vector<2x64xbf16>, vector<2x64xbf16> -> vector<2x256xbf16>
    %cst_34 = arith.constant dense<0.000000e+00> : vector<2x128xf32>
    %35 = tpu.matmul %34, %33, %cst_34 {dimension_numbers = #tpu.dot_dimension_numbers<[1], [0], [0], [1], [0, 0, 1, 1], [], []>} : vector<2x256xbf16>, vector<256x128xbf16>, vector<2x128xf32> -> vector<2x128xf32>
    %36 = tpu.concatenate %4, %6, %8, %10 in 1 : vector<2x64xbf16>, vector<2x64xbf16>, vector<2x64xbf16>, vector<2x64xbf16> -> vector<2x256xbf16>
    %cst_35 = arith.constant dense<0.000000e+00> : vector<2x128xf32>
    %37 = tpu.matmul %36, %33, %cst_35 {dimension_numbers = #tpu.dot_dimension_numbers<[1], [0], [0], [1], [0, 0, 1, 1], [], []>} : vector<2x256xbf16>, vector<256x128xbf16>, vector<2x128xf32> -> vector<2x128xf32>
    %38 = tpu.concatenate %8, %10, %12, %14 in 1 : vector<2x64xbf16>, vector<2x64xbf16>, vector<2x64xbf16>, vector<2x64xbf16> -> vector<2x256xbf16>
    %cst_36 = arith.constant dense<0.000000e+00> : vector<2x128xf32>
    %39 = tpu.matmul %38, %33, %cst_36 {dimension_numbers = #tpu.dot_dimension_numbers<[1], [0], [0], [1], [0, 0, 1, 1], [], []>} : vector<2x256xbf16>, vector<256x128xbf16>, vector<2x128xf32> -> vector<2x128xf32>
    %40 = tpu.concatenate %12, %14, %16, %18 in 1 : vector<2x64xbf16>, vector<2x64xbf16>, vector<2x64xbf16>, vector<2x64xbf16> -> vector<2x256xbf16>
    %cst_37 = arith.constant dense<0.000000e+00> : vector<2x128xf32>
    %41 = tpu.matmul %40, %33, %cst_37 {dimension_numbers = #tpu.dot_dimension_numbers<[1], [0], [0], [1], [0, 0, 1, 1], [], []>} : vector<2x256xbf16>, vector<256x128xbf16>, vector<2x128xf32> -> vector<2x128xf32>
    %42 = tpu.concatenate %16, %18, %20, %22 in 1 : vector<2x64xbf16>, vector<2x64xbf16>, vector<2x64xbf16>, vector<2x64xbf16> -> vector<2x256xbf16>
    %cst_38 = arith.constant dense<0.000000e+00> : vector<2x128xf32>
    %43 = tpu.matmul %42, %33, %cst_38 {dimension_numbers = #tpu.dot_dimension_numbers<[1], [0], [0], [1], [0, 0, 1, 1], [], []>} : vector<2x256xbf16>, vector<256x128xbf16>, vector<2x128xf32> -> vector<2x128xf32>
    %44 = tpu.concatenate %20, %22, %24, %26 in 1 : vector<2x64xbf16>, vector<2x64xbf16>, vector<2x64xbf16>, vector<2x64xbf16> -> vector<2x256xbf16>
    %cst_39 = arith.constant dense<0.000000e+00> : vector<2x128xf32>
    %45 = tpu.matmul %44, %33, %cst_39 {dimension_numbers = #tpu.dot_dimension_numbers<[1], [0], [0], [1], [0, 0, 1, 1], [], []>} : vector<2x256xbf16>, vector<256x128xbf16>, vector<2x128xf32> -> vector<2x128xf32>
    %46 = tpu.concatenate %24, %26, %28, %30 in 1 : vector<2x64xbf16>, vector<2x64xbf16>, vector<2x64xbf16>, vector<2x64xbf16> -> vector<2x256xbf16>
    %cst_40 = arith.constant dense<0.000000e+00> : vector<2x128xf32>
    %47 = tpu.matmul %46, %33, %cst_40 {dimension_numbers = #tpu.dot_dimension_numbers<[1], [0], [0], [1], [0, 0, 1, 1], [], []>} : vector<2x256xbf16>, vector<256x128xbf16>, vector<2x128xf32> -> vector<2x128xf32>
    %48 = tpu.concatenate %28, %30, %32, %0 in 1 : vector<2x64xbf16>, vector<2x64xbf16>, vector<2x64xbf16>, vector<2x64xbf16> -> vector<2x256xbf16>
    %cst_41 = arith.constant dense<0.000000e+00> : vector<2x128xf32>
    %49 = tpu.matmul %48, %33, %cst_41 {dimension_numbers = #tpu.dot_dimension_numbers<[1], [0], [0], [1], [0, 0, 1, 1], [], []>} : vector<2x256xbf16>, vector<256x128xbf16>, vector<2x128xf32> -> vector<2x128xf32>
    %cst_42 = arith.constant 0.000000e+00 : f32
    %50 = vector.broadcast %cst_42 : f32 to vector<2x128xf32>
    %51 = arith.cmpf oge, %35, %50 : vector<2x128xf32>
    %cst_43 = arith.constant 2.000000e-01 : f32
    %52 = vector.broadcast %cst_43 : f32 to vector<2x128xf32>
    %53 = arith.mulf %52, %35 : vector<2x128xf32>
    %54 = arith.select %51, %35, %53 : vector<2x128xi1>, vector<2x128xf32>
    %cst_44 = arith.constant 0.000000e+00 : f32
    %55 = vector.broadcast %cst_44 : f32 to vector<2x128xf32>
    %56 = arith.cmpf oge, %37, %55 : vector<2x128xf32>
    %cst_45 = arith.constant 2.000000e-01 : f32
    %57 = vector.broadcast %cst_45 : f32 to vector<2x128xf32>
    %58 = arith.mulf %57, %37 : vector<2x128xf32>
    %59 = arith.select %56, %37, %58 : vector<2x128xi1>, vector<2x128xf32>
    %cst_46 = arith.constant 0.000000e+00 : f32
    %60 = vector.broadcast %cst_46 : f32 to vector<2x128xf32>
    %61 = arith.cmpf oge, %39, %60 : vector<2x128xf32>
    %cst_47 = arith.constant 2.000000e-01 : f32
    %62 = vector.broadcast %cst_47 : f32 to vector<2x128xf32>
    %63 = arith.mulf %62, %39 : vector<2x128xf32>
    %64 = arith.select %61, %39, %63 : vector<2x128xi1>, vector<2x128xf32>
    %cst_48 = arith.constant 0.000000e+00 : f32
    %65 = vector.broadcast %cst_48 : f32 to vector<2x128xf32>
    %66 = arith.cmpf oge, %41, %65 : vector<2x128xf32>
    %cst_49 = arith.constant 2.000000e-01 : f32
    %67 = vector.broadcast %cst_49 : f32 to vector<2x128xf32>
    %68 = arith.mulf %67, %41 : vector<2x128xf32>
    %69 = arith.select %66, %41, %68 : vector<2x128xi1>, vector<2x128xf32>
    %cst_50 = arith.constant 0.000000e+00 : f32
    %70 = vector.broadcast %cst_50 : f32 to vector<2x128xf32>
    %71 = arith.cmpf oge, %43, %70 : vector<2x128xf32>
    %cst_51 = arith.constant 2.000000e-01 : f32
    %72 = vector.broadcast %cst_51 : f32 to vector<2x128xf32>
    %73 = arith.mulf %72, %43 : vector<2x128xf32>
    %74 = arith.select %71, %43, %73 : vector<2x128xi1>, vector<2x128xf32>
    %cst_52 = arith.constant 0.000000e+00 : f32
    %75 = vector.broadcast %cst_52 : f32 to vector<2x128xf32>
    %76 = arith.cmpf oge, %45, %75 : vector<2x128xf32>
    %cst_53 = arith.constant 2.000000e-01 : f32
    %77 = vector.broadcast %cst_53 : f32 to vector<2x128xf32>
    %78 = arith.mulf %77, %45 : vector<2x128xf32>
    %79 = arith.select %76, %45, %78 : vector<2x128xi1>, vector<2x128xf32>
    %cst_54 = arith.constant 0.000000e+00 : f32
    %80 = vector.broadcast %cst_54 : f32 to vector<2x128xf32>
    %81 = arith.cmpf oge, %47, %80 : vector<2x128xf32>
    %cst_55 = arith.constant 2.000000e-01 : f32
    %82 = vector.broadcast %cst_55 : f32 to vector<2x128xf32>
    %83 = arith.mulf %82, %47 : vector<2x128xf32>
    %84 = arith.select %81, %47, %83 : vector<2x128xi1>, vector<2x128xf32>
    %cst_56 = arith.constant 0.000000e+00 : f32
    %85 = vector.broadcast %cst_56 : f32 to vector<2x128xf32>
    %86 = arith.cmpf oge, %49, %85 : vector<2x128xf32>
    %cst_57 = arith.constant 2.000000e-01 : f32
    %87 = vector.broadcast %cst_57 : f32 to vector<2x128xf32>
    %88 = arith.mulf %87, %49 : vector<2x128xf32>
    %89 = arith.select %86, %49, %88 : vector<2x128xi1>, vector<2x128xf32>
    %90 = arith.truncf %54 : vector<2x128xf32> to vector<2x128xbf16>
    %91 = arith.truncf %59 : vector<2x128xf32> to vector<2x128xbf16>
    %92 = arith.truncf %64 : vector<2x128xf32> to vector<2x128xbf16>
    %93 = arith.truncf %69 : vector<2x128xf32> to vector<2x128xbf16>
    %94 = arith.truncf %74 : vector<2x128xf32> to vector<2x128xbf16>
    %95 = arith.truncf %79 : vector<2x128xf32> to vector<2x128xbf16>
    %96 = arith.truncf %84 : vector<2x128xf32> to vector<2x128xbf16>
    %97 = arith.truncf %89 : vector<2x128xf32> to vector<2x128xbf16>
    %cst_58 = arith.constant 0.000000e+00 : bf16
    %98 = vector.broadcast %cst_58 : bf16 to vector<2x128xbf16>
    %c0_59 = arith.constant 0 : index
    %c0_60 = arith.constant 0 : index
    %99 = vector.load %arg2[%c0_59, %c0_60] : memref<512x128xbf16, #tpu.memory_space<vmem>>, vector<512x128xbf16>
    %100 = tpu.concatenate %98, %90, %91, %92 in 1 : vector<2x128xbf16>, vector<2x128xbf16>, vector<2x128xbf16>, vector<2x128xbf16> -> vector<2x512xbf16>
    %cst_61 = arith.constant dense<0.000000e+00> : vector<2x128xf32>
    %101 = tpu.matmul %100, %99, %cst_61 {dimension_numbers = #tpu.dot_dimension_numbers<[1], [0], [0], [1], [0, 0, 1, 1], [], []>} : vector<2x512xbf16>, vector<512x128xbf16>, vector<2x128xf32> -> vector<2x128xf32>
    %102 = tpu.concatenate %91, %92, %93, %94 in 1 : vector<2x128xbf16>, vector<2x128xbf16>, vector<2x128xbf16>, vector<2x128xbf16> -> vector<2x512xbf16>
    %cst_62 = arith.constant dense<0.000000e+00> : vector<2x128xf32>
    %103 = tpu.matmul %102, %99, %cst_62 {dimension_numbers = #tpu.dot_dimension_numbers<[1], [0], [0], [1], [0, 0, 1, 1], [], []>} : vector<2x512xbf16>, vector<512x128xbf16>, vector<2x128xf32> -> vector<2x128xf32>
    %104 = tpu.concatenate %93, %94, %95, %96 in 1 : vector<2x128xbf16>, vector<2x128xbf16>, vector<2x128xbf16>, vector<2x128xbf16> -> vector<2x512xbf16>
    %cst_63 = arith.constant dense<0.000000e+00> : vector<2x128xf32>
    %105 = tpu.matmul %104, %99, %cst_63 {dimension_numbers = #tpu.dot_dimension_numbers<[1], [0], [0], [1], [0, 0, 1, 1], [], []>} : vector<2x512xbf16>, vector<512x128xbf16>, vector<2x128xf32> -> vector<2x128xf32>
    %106 = tpu.concatenate %95, %96, %97, %98 in 1 : vector<2x128xbf16>, vector<2x128xbf16>, vector<2x128xbf16>, vector<2x128xbf16> -> vector<2x512xbf16>
    %cst_64 = arith.constant dense<0.000000e+00> : vector<2x128xf32>
    %107 = tpu.matmul %106, %99, %cst_64 {dimension_numbers = #tpu.dot_dimension_numbers<[1], [0], [0], [1], [0, 0, 1, 1], [], []>} : vector<2x512xbf16>, vector<512x128xbf16>, vector<2x128xf32> -> vector<2x128xf32>
    %cst_65 = arith.constant 0.000000e+00 : f32
    %108 = vector.broadcast %cst_65 : f32 to vector<1x128xf32>
    %cst_66 = arith.constant 0.000000e+00 : f32
    %109 = vector.broadcast %cst_66 : f32 to vector<1x128xf32>
    %cst_67 = arith.constant dense<0.000000e+00> : vector<128xf32>
    %110 = vector.multi_reduction <add>, %101, %cst_67 [0] : vector<2x128xf32> to vector<128xf32>
    %111 = vector.shape_cast %110 : vector<128xf32> to vector<1x128xf32>
    %112 = arith.addf %108, %111 : vector<1x128xf32>
    %113 = arith.mulf %101, %101 : vector<2x128xf32>
    %cst_68 = arith.constant dense<0.000000e+00> : vector<128xf32>
    %114 = vector.multi_reduction <add>, %113, %cst_68 [0] : vector<2x128xf32> to vector<128xf32>
    %115 = vector.shape_cast %114 : vector<128xf32> to vector<1x128xf32>
    %116 = arith.addf %109, %115 : vector<1x128xf32>
    %cst_69 = arith.constant dense<0.000000e+00> : vector<128xf32>
    %117 = vector.multi_reduction <add>, %103, %cst_69 [0] : vector<2x128xf32> to vector<128xf32>
    %118 = vector.shape_cast %117 : vector<128xf32> to vector<1x128xf32>
    %119 = arith.addf %112, %118 : vector<1x128xf32>
    %120 = arith.mulf %103, %103 : vector<2x128xf32>
    %cst_70 = arith.constant dense<0.000000e+00> : vector<128xf32>
    %121 = vector.multi_reduction <add>, %120, %cst_70 [0] : vector<2x128xf32> to vector<128xf32>
    %122 = vector.shape_cast %121 : vector<128xf32> to vector<1x128xf32>
    %123 = arith.addf %116, %122 : vector<1x128xf32>
    %cst_71 = arith.constant dense<0.000000e+00> : vector<128xf32>
    %124 = vector.multi_reduction <add>, %105, %cst_71 [0] : vector<2x128xf32> to vector<128xf32>
    %125 = vector.shape_cast %124 : vector<128xf32> to vector<1x128xf32>
    %126 = arith.addf %119, %125 : vector<1x128xf32>
    %127 = arith.mulf %105, %105 : vector<2x128xf32>
    %cst_72 = arith.constant dense<0.000000e+00> : vector<128xf32>
    %128 = vector.multi_reduction <add>, %127, %cst_72 [0] : vector<2x128xf32> to vector<128xf32>
    %129 = vector.shape_cast %128 : vector<128xf32> to vector<1x128xf32>
    %130 = arith.addf %123, %129 : vector<1x128xf32>
    %cst_73 = arith.constant dense<0.000000e+00> : vector<128xf32>
    %131 = vector.multi_reduction <add>, %107, %cst_73 [0] : vector<2x128xf32> to vector<128xf32>
    %132 = vector.shape_cast %131 : vector<128xf32> to vector<1x128xf32>
    %133 = arith.addf %126, %132 : vector<1x128xf32>
    %134 = arith.mulf %107, %107 : vector<2x128xf32>
    %cst_74 = arith.constant dense<0.000000e+00> : vector<128xf32>
    %135 = vector.multi_reduction <add>, %134, %cst_74 [0] : vector<2x128xf32> to vector<128xf32>
    %136 = vector.shape_cast %135 : vector<128xf32> to vector<1x128xf32>
    %137 = arith.addf %130, %136 : vector<1x128xf32>
    %c32_i32 = arith.constant 32 : i32
    %138 = tpu.dynamic_rotate %133 by %c32_i32 dim 1 : vector<1x128xf32>, i32 -> vector<1x128xf32>
    %139 = arith.addf %133, %138 : vector<1x128xf32>
    %c32_i32_75 = arith.constant 32 : i32
    %140 = tpu.dynamic_rotate %137 by %c32_i32_75 dim 1 : vector<1x128xf32>, i32 -> vector<1x128xf32>
    %141 = arith.addf %137, %140 : vector<1x128xf32>
    %c64_i32 = arith.constant 64 : i32
    %142 = tpu.dynamic_rotate %139 by %c64_i32 dim 1 : vector<1x128xf32>, i32 -> vector<1x128xf32>
    %143 = arith.addf %139, %142 : vector<1x128xf32>
    %c64_i32_76 = arith.constant 64 : i32
    %144 = tpu.dynamic_rotate %141 by %c64_i32_76 dim 1 : vector<1x128xf32>, i32 -> vector<1x128xf32>
    %145 = arith.addf %141, %144 : vector<1x128xf32>
    %cst_77 = arith.constant 3.200000e+01 : f32
    %146 = vector.broadcast %cst_77 : f32 to vector<1x128xf32>
    %147 = arith.divf %143, %146 : vector<1x128xf32>
    %cst_78 = arith.constant 3.200000e+01 : f32
    %148 = vector.broadcast %cst_78 : f32 to vector<1x128xf32>
    %149 = arith.divf %145, %148 : vector<1x128xf32>
    %150 = arith.mulf %147, %147 : vector<1x128xf32>
    %151 = arith.subf %149, %150 : vector<1x128xf32>
    %c0_79 = arith.constant 0 : index
    %c0_80 = arith.constant 0 : index
    %152 = vector.load %arg5[%c0_79, %c0_80] : memref<1x128xf32, #tpu.memory_space<vmem>>, vector<1x128xf32>
    %cst_81 = arith.constant 9.99999974E-6 : f32
    %153 = vector.broadcast %cst_81 : f32 to vector<1x128xf32>
    %154 = arith.addf %151, %153 : vector<1x128xf32>
    %155 = math.rsqrt %154 : vector<1x128xf32>
    %156 = arith.mulf %152, %155 : vector<1x128xf32>
    %c0_82 = arith.constant 0 : index
    %c0_83 = arith.constant 0 : index
    %157 = vector.load %arg6[%c0_82, %c0_83] : memref<1x128xf32, #tpu.memory_space<vmem>>, vector<1x128xf32>
    %158 = arith.mulf %147, %156 : vector<1x128xf32>
    %159 = arith.subf %157, %158 : vector<1x128xf32>
    %160 = vector.broadcast %156 : vector<1x128xf32> to vector<2x128xf32>
    %161 = arith.mulf %101, %160 : vector<2x128xf32>
    %162 = vector.broadcast %159 : vector<1x128xf32> to vector<2x128xf32>
    %163 = arith.addf %161, %162 : vector<2x128xf32>
    %164 = vector.broadcast %156 : vector<1x128xf32> to vector<2x128xf32>
    %165 = arith.mulf %103, %164 : vector<2x128xf32>
    %166 = vector.broadcast %159 : vector<1x128xf32> to vector<2x128xf32>
    %167 = arith.addf %165, %166 : vector<2x128xf32>
    %168 = vector.broadcast %156 : vector<1x128xf32> to vector<2x128xf32>
    %169 = arith.mulf %105, %168 : vector<2x128xf32>
    %170 = vector.broadcast %159 : vector<1x128xf32> to vector<2x128xf32>
    %171 = arith.addf %169, %170 : vector<2x128xf32>
    %172 = vector.broadcast %156 : vector<1x128xf32> to vector<2x128xf32>
    %173 = arith.mulf %107, %172 : vector<2x128xf32>
    %174 = vector.broadcast %159 : vector<1x128xf32> to vector<2x128xf32>
    %175 = arith.addf %173, %174 : vector<2x128xf32>
    %cst_84 = arith.constant 0.000000e+00 : f32
    %176 = vector.broadcast %cst_84 : f32 to vector<2x128xf32>
    %177 = arith.cmpf oge, %163, %176 : vector<2x128xf32>
    %cst_85 = arith.constant 2.000000e-01 : f32
    %178 = vector.broadcast %cst_85 : f32 to vector<2x128xf32>
    %179 = arith.mulf %178, %163 : vector<2x128xf32>
    %180 = arith.select %177, %163, %179 : vector<2x128xi1>, vector<2x128xf32>
    %cst_86 = arith.constant 0.000000e+00 : f32
    %181 = vector.broadcast %cst_86 : f32 to vector<2x128xf32>
    %182 = arith.cmpf oge, %167, %181 : vector<2x128xf32>
    %cst_87 = arith.constant 2.000000e-01 : f32
    %183 = vector.broadcast %cst_87 : f32 to vector<2x128xf32>
    %184 = arith.mulf %183, %167 : vector<2x128xf32>
    %185 = arith.select %182, %167, %184 : vector<2x128xi1>, vector<2x128xf32>
    %cst_88 = arith.constant 0.000000e+00 : f32
    %186 = vector.broadcast %cst_88 : f32 to vector<2x128xf32>
    %187 = arith.cmpf oge, %171, %186 : vector<2x128xf32>
    %cst_89 = arith.constant 2.000000e-01 : f32
    %188 = vector.broadcast %cst_89 : f32 to vector<2x128xf32>
    %189 = arith.mulf %188, %171 : vector<2x128xf32>
    %190 = arith.select %187, %171, %189 : vector<2x128xi1>, vector<2x128xf32>
    %cst_90 = arith.constant 0.000000e+00 : f32
    %191 = vector.broadcast %cst_90 : f32 to vector<2x128xf32>
    %192 = arith.cmpf oge, %175, %191 : vector<2x128xf32>
    %cst_91 = arith.constant 2.000000e-01 : f32
    %193 = vector.broadcast %cst_91 : f32 to vector<2x128xf32>
    %194 = arith.mulf %193, %175 : vector<2x128xf32>
    %195 = arith.select %192, %175, %194 : vector<2x128xi1>, vector<2x128xf32>
    %196 = arith.truncf %180 : vector<2x128xf32> to vector<2x128xbf16>
    %197 = arith.truncf %185 : vector<2x128xf32> to vector<2x128xbf16>
    %198 = arith.truncf %190 : vector<2x128xf32> to vector<2x128xbf16>
    %199 = arith.truncf %195 : vector<2x128xf32> to vector<2x128xbf16>
    %cst_92 = arith.constant 0.000000e+00 : bf16
    %200 = vector.broadcast %cst_92 : bf16 to vector<2x128xbf16>
    %c0_93 = arith.constant 0 : index
    %c0_94 = arith.constant 0 : index
    %201 = vector.load %arg3[%c0_93, %c0_94] : memref<512x128xbf16, #tpu.memory_space<vmem>>, vector<512x128xbf16>
    %202 = tpu.concatenate %200, %196, %197, %198 in 1 : vector<2x128xbf16>, vector<2x128xbf16>, vector<2x128xbf16>, vector<2x128xbf16> -> vector<2x512xbf16>
    %cst_95 = arith.constant dense<0.000000e+00> : vector<2x128xf32>
    %203 = tpu.matmul %202, %201, %cst_95 {dimension_numbers = #tpu.dot_dimension_numbers<[1], [0], [0], [1], [0, 0, 1, 1], [], []>} : vector<2x512xbf16>, vector<512x128xbf16>, vector<2x128xf32> -> vector<2x128xf32>
    %204 = tpu.concatenate %197, %198, %199, %200 in 1 : vector<2x128xbf16>, vector<2x128xbf16>, vector<2x128xbf16>, vector<2x128xbf16> -> vector<2x512xbf16>
    %cst_96 = arith.constant dense<0.000000e+00> : vector<2x128xf32>
    %205 = tpu.matmul %204, %201, %cst_96 {dimension_numbers = #tpu.dot_dimension_numbers<[1], [0], [0], [1], [0, 0, 1, 1], [], []>} : vector<2x512xbf16>, vector<512x128xbf16>, vector<2x128xf32> -> vector<2x128xf32>
    %cst_97 = arith.constant 0.000000e+00 : f32
    %206 = vector.broadcast %cst_97 : f32 to vector<1x128xf32>
    %cst_98 = arith.constant 0.000000e+00 : f32
    %207 = vector.broadcast %cst_98 : f32 to vector<1x128xf32>
    %cst_99 = arith.constant dense<0.000000e+00> : vector<128xf32>
    %208 = vector.multi_reduction <add>, %203, %cst_99 [0] : vector<2x128xf32> to vector<128xf32>
    %209 = vector.shape_cast %208 : vector<128xf32> to vector<1x128xf32>
    %210 = arith.addf %206, %209 : vector<1x128xf32>
    %211 = arith.mulf %203, %203 : vector<2x128xf32>
    %cst_100 = arith.constant dense<0.000000e+00> : vector<128xf32>
    %212 = vector.multi_reduction <add>, %211, %cst_100 [0] : vector<2x128xf32> to vector<128xf32>
    %213 = vector.shape_cast %212 : vector<128xf32> to vector<1x128xf32>
    %214 = arith.addf %207, %213 : vector<1x128xf32>
    %cst_101 = arith.constant dense<0.000000e+00> : vector<128xf32>
    %215 = vector.multi_reduction <add>, %205, %cst_101 [0] : vector<2x128xf32> to vector<128xf32>
    %216 = vector.shape_cast %215 : vector<128xf32> to vector<1x128xf32>
    %217 = arith.addf %210, %216 : vector<1x128xf32>
    %218 = arith.mulf %205, %205 : vector<2x128xf32>
    %cst_102 = arith.constant dense<0.000000e+00> : vector<128xf32>
    %219 = vector.multi_reduction <add>, %218, %cst_102 [0] : vector<2x128xf32> to vector<128xf32>
    %220 = vector.shape_cast %219 : vector<128xf32> to vector<1x128xf32>
    %221 = arith.addf %214, %220 : vector<1x128xf32>
    %c64_i32_103 = arith.constant 64 : i32
    %222 = tpu.dynamic_rotate %217 by %c64_i32_103 dim 1 : vector<1x128xf32>, i32 -> vector<1x128xf32>
    %223 = arith.addf %217, %222 : vector<1x128xf32>
    %c64_i32_104 = arith.constant 64 : i32
    %224 = tpu.dynamic_rotate %221 by %c64_i32_104 dim 1 : vector<1x128xf32>, i32 -> vector<1x128xf32>
    %225 = arith.addf %221, %224 : vector<1x128xf32>
    %cst_105 = arith.constant 8.000000e+00 : f32
    %226 = vector.broadcast %cst_105 : f32 to vector<1x128xf32>
    %227 = arith.divf %223, %226 : vector<1x128xf32>
    %cst_106 = arith.constant 8.000000e+00 : f32
    %228 = vector.broadcast %cst_106 : f32 to vector<1x128xf32>
    %229 = arith.divf %225, %228 : vector<1x128xf32>
    %230 = arith.mulf %227, %227 : vector<1x128xf32>
    %231 = arith.subf %229, %230 : vector<1x128xf32>
    %c0_107 = arith.constant 0 : index
    %c0_108 = arith.constant 0 : index
    %232 = vector.load %arg7[%c0_107, %c0_108] : memref<1x128xf32, #tpu.memory_space<vmem>>, vector<1x128xf32>
    %cst_109 = arith.constant 9.99999974E-6 : f32
    %233 = vector.broadcast %cst_109 : f32 to vector<1x128xf32>
    %234 = arith.addf %231, %233 : vector<1x128xf32>
    %235 = math.rsqrt %234 : vector<1x128xf32>
    %236 = arith.mulf %232, %235 : vector<1x128xf32>
    %c0_110 = arith.constant 0 : index
    %c0_111 = arith.constant 0 : index
    %237 = vector.load %arg8[%c0_110, %c0_111] : memref<1x128xf32, #tpu.memory_space<vmem>>, vector<1x128xf32>
    %238 = arith.mulf %227, %236 : vector<1x128xf32>
    %239 = arith.subf %237, %238 : vector<1x128xf32>
    %240 = vector.broadcast %236 : vector<1x128xf32> to vector<2x128xf32>
    %241 = arith.mulf %203, %240 : vector<2x128xf32>
    %242 = vector.broadcast %239 : vector<1x128xf32> to vector<2x128xf32>
    %243 = arith.addf %241, %242 : vector<2x128xf32>
    %244 = vector.broadcast %236 : vector<1x128xf32> to vector<2x128xf32>
    %245 = arith.mulf %205, %244 : vector<2x128xf32>
    %246 = vector.broadcast %239 : vector<1x128xf32> to vector<2x128xf32>
    %247 = arith.addf %245, %246 : vector<2x128xf32>
    %cst_112 = arith.constant 0.000000e+00 : f32
    %248 = vector.broadcast %cst_112 : f32 to vector<2x128xf32>
    %249 = arith.cmpf oge, %243, %248 : vector<2x128xf32>
    %cst_113 = arith.constant 2.000000e-01 : f32
    %250 = vector.broadcast %cst_113 : f32 to vector<2x128xf32>
    %251 = arith.mulf %250, %243 : vector<2x128xf32>
    %252 = arith.select %249, %243, %251 : vector<2x128xi1>, vector<2x128xf32>
    %cst_114 = arith.constant 0.000000e+00 : f32
    %253 = vector.broadcast %cst_114 : f32 to vector<2x128xf32>
    %254 = arith.cmpf oge, %247, %253 : vector<2x128xf32>
    %cst_115 = arith.constant 2.000000e-01 : f32
    %255 = vector.broadcast %cst_115 : f32 to vector<2x128xf32>
    %256 = arith.mulf %255, %247 : vector<2x128xf32>
    %257 = arith.select %254, %247, %256 : vector<2x128xi1>, vector<2x128xf32>
    %258 = arith.truncf %252 : vector<2x128xf32> to vector<2x128xbf16>
    %259 = arith.truncf %257 : vector<2x128xf32> to vector<2x128xbf16>
    %cst_116 = arith.constant 0.000000e+00 : bf16
    %260 = vector.broadcast %cst_116 : bf16 to vector<2x128xbf16>
    %c0_117 = arith.constant 0 : index
    %c0_118 = arith.constant 0 : index
    %261 = vector.load %arg4[%c0_117, %c0_118] : memref<512x128xbf16, #tpu.memory_space<vmem>>, vector<512x128xbf16>
    %262 = tpu.concatenate %260, %258, %259, %260 in 1 : vector<2x128xbf16>, vector<2x128xbf16>, vector<2x128xbf16>, vector<2x128xbf16> -> vector<2x512xbf16>
    %cst_119 = arith.constant dense<0.000000e+00> : vector<2x128xf32>
    %263 = tpu.matmul %262, %261, %cst_119 {dimension_numbers = #tpu.dot_dimension_numbers<[1], [0], [0], [1], [0, 0, 1, 1], [], []>} : vector<2x512xbf16>, vector<512x128xbf16>, vector<2x128xf32> -> vector<2x128xf32>
    %cst_120 = arith.constant 0.000000e+00 : f32
    %264 = vector.broadcast %cst_120 : f32 to vector<1x128xf32>
    %cst_121 = arith.constant 0.000000e+00 : f32
    %265 = vector.broadcast %cst_121 : f32 to vector<1x128xf32>
    %cst_122 = arith.constant dense<0.000000e+00> : vector<128xf32>
    %266 = vector.multi_reduction <add>, %263, %cst_122 [0] : vector<2x128xf32> to vector<128xf32>
    %267 = vector.shape_cast %266 : vector<128xf32> to vector<1x128xf32>
    %268 = arith.addf %264, %267 : vector<1x128xf32>
    %269 = arith.mulf %263, %263 : vector<2x128xf32>
    %cst_123 = arith.constant dense<0.000000e+00> : vector<128xf32>
    %270 = vector.multi_reduction <add>, %269, %cst_123 [0] : vector<2x128xf32> to vector<128xf32>
    %271 = vector.shape_cast %270 : vector<128xf32> to vector<1x128xf32>
    %272 = arith.addf %265, %271 : vector<1x128xf32>
    %cst_124 = arith.constant 2.000000e+00 : f32
    %273 = vector.broadcast %cst_124 : f32 to vector<1x128xf32>
    %274 = arith.divf %268, %273 : vector<1x128xf32>
    %cst_125 = arith.constant 2.000000e+00 : f32
    %275 = vector.broadcast %cst_125 : f32 to vector<1x128xf32>
    %276 = arith.divf %272, %275 : vector<1x128xf32>
    %277 = arith.mulf %274, %274 : vector<1x128xf32>
    %278 = arith.subf %276, %277 : vector<1x128xf32>
    %c0_126 = arith.constant 0 : index
    %c0_127 = arith.constant 0 : index
    %279 = vector.load %arg9[%c0_126, %c0_127] : memref<1x128xf32, #tpu.memory_space<vmem>>, vector<1x128xf32>
    %cst_128 = arith.constant 9.99999974E-6 : f32
    %280 = vector.broadcast %cst_128 : f32 to vector<1x128xf32>
    %281 = arith.addf %278, %280 : vector<1x128xf32>
    %282 = math.rsqrt %281 : vector<1x128xf32>
    %283 = arith.mulf %279, %282 : vector<1x128xf32>
    %c0_129 = arith.constant 0 : index
    %c0_130 = arith.constant 0 : index
    %284 = vector.load %arg10[%c0_129, %c0_130] : memref<1x128xf32, #tpu.memory_space<vmem>>, vector<1x128xf32>
    %285 = arith.mulf %274, %283 : vector<1x128xf32>
    %286 = arith.subf %284, %285 : vector<1x128xf32>
    %287 = vector.broadcast %283 : vector<1x128xf32> to vector<2x128xf32>
    %288 = arith.mulf %263, %287 : vector<2x128xf32>
    %289 = vector.broadcast %286 : vector<1x128xf32> to vector<2x128xf32>
    %290 = arith.addf %288, %289 : vector<2x128xf32>
    %cst_131 = arith.constant 0.000000e+00 : f32
    %291 = vector.broadcast %cst_131 : f32 to vector<2x128xf32>
    %292 = arith.cmpf oge, %290, %291 : vector<2x128xf32>
    %cst_132 = arith.constant 2.000000e-01 : f32
    %293 = vector.broadcast %cst_132 : f32 to vector<2x128xf32>
    %294 = arith.mulf %293, %290 : vector<2x128xf32>
    %295 = arith.select %292, %290, %294 : vector<2x128xi1>, vector<2x128xf32>
    %c0_133 = arith.constant 0 : index
    %c0_134 = arith.constant 0 : index
    %296 = vector.load %arg11[%c0_133, %c0_134] : memref<1x128xf32, #tpu.memory_space<vmem>>, vector<1x128xf32>
    %297 = vector.broadcast %296 : vector<1x128xf32> to vector<2x128xf32>
    %298 = arith.mulf %295, %297 : vector<2x128xf32>
    %cst_135 = arith.constant dense<0.000000e+00> : vector<2xf32>
    %299 = vector.multi_reduction <add>, %298, %cst_135 [1] : vector<2x128xf32> to vector<2xf32>
    %300 = vector.shape_cast %299 : vector<2xf32> to vector<2x1xf32>
    %301 = arith.negf %300 : vector<2x1xf32>
    %302 = math.exp %301 : vector<2x1xf32>
    %cst_136 = arith.constant 1.000000e+00 : f32
    %303 = vector.broadcast %cst_136 : f32 to vector<2x1xf32>
    %304 = arith.addf %303, %302 : vector<2x1xf32>
    %305 = arith.divf %303, %304 : vector<2x1xf32>
    %306 = vector.shape_cast %305 : vector<2x1xf32> to vector<2x1xf32>
    %307 = vector.broadcast %306 : vector<2x1xf32> to vector<2x128xf32>
    %308 = tpu.concatenate %295, %307 in 1 : vector<2x128xf32>, vector<2x128xf32> -> vector<2x256xf32>
    %c0_137 = arith.constant 0 : index
    %c0_138 = arith.constant 0 : index
    %309 = vector.load %arg12[%c0_137, %c0_138] : memref<2x256xf32, #tpu.memory_space<vmem>>, vector<2x256xf32>
    tpu.vector_store %arg12[%c0_137, %c0_138], %308 {strides = array<i32>} : memref<2x256xf32, #tpu.memory_space<vmem>>, vector<2x256xf32>,
    return
  }
}

</mosaic_0001>

<llo_original>
// kernel: tile.25
$region0: #{tile.25}
  #allocation0 [shape = 's32[1]{0}', space=sflag, size = 0x4, scoped, tag = 'scoped memory for tile.25']
  %s0 = inlined_call_operand.vmem [shape: f32[32], index: 0, kind: input, shape index: {}]
  %s1 = inlined_call_operand.vmem [shape: f32[4,32], index: 1, kind: output, shape index: {}]
  // Predicated region
  $region2: #{tile.25} parent=0 // pred_check
    _
  $region3: #{tile.25} parent=0 // pred_check_branch
    %3 = sbr.rel (0) target = $region5
  $region4: #{tile.25} parent=0 // pred_region
    _
  $region5: #{tile.25} parent=0 // pred_fallthru
    _
  %v4 = vld [vmem:[%s0] ss:$0 sm:$0xff]
  %5 = vst [vmem:[%s1] sm:$0xf] %v4

// kernel: tile.26
$region0: #{tile.26}
  %s0 = inlined_call_operand.vmem [shape: f32[4,32], index: 0, kind: input, shape index: {}]
  %s1 = inlined_call_operand.vmem [shape: f32[1,128], index: 1, kind: output, shape index: {}]
  $region1: #{tile.26} parent=0
    #allocation0 [shape = 'u8[4096]{0}', space=vmem, size = 0x1000, scoped, tag = 'scoped mem for output reshape']
    #allocation1 [shape = 'u8[4096]{0}', space=vmem, size = 0x1000, scoped, tag = 'scoped mem for input reshape']
    %s3 = sshllo.u32 0, 4
    %v4 = vld [vmem:[%s0] sm:%s3]
    %5 = vst [vmem:[#allocation1] sm:%s3] %v4
    %v6 = vld [vmem:[#allocation1] sm:$0x1]
    %vm7 = vcmask 261120
    %8 = vst.msk [vmem:[#allocation0] sm:$0x1] %vm7, %v6
    %s9 = scalar_lea.vmem [#allocation1], 3
    %v10 = vld [vmem:[%s9] sm:$0x1]
    %11 = vrot.lane.b32.xlu0 %v10, 96
    %v12 = vpop.permute.xlu0 %11
    %vm13 = vcmask 1048320
    %14 = vst.msk [vmem:[#allocation0] sm:$0x1] %vm13, %v12
    %s15 = scalar_lea.vmem [#allocation1], 2
    %v16 = vld [vmem:[%s15] sm:$0x1]
    %17 = vrot.lane.b32.xlu0 %v16, 64
    %v18 = vpop.permute.xlu0 %17
    %vm19 = vcmask 785920
    %20 = vst.msk [vmem:[#allocation0] sm:$0x1] %vm19, %v18
    %s21 = scalar_lea.vmem [#allocation1], 1
    %v22 = vld [vmem:[%s21] sm:$0x1]
    %23 = vrot.lane.b32.xlu0 %v22, 32
    %v24 = vpop.permute.xlu0 %23
    %vm25 = vcmask 523520
    %26 = vst.msk [vmem:[#allocation0] sm:$0x1] %vm25, %v24
    %s28 = sshllo.u32 0, 1
    %v30 = vld [vmem:[#allocation0] sm:%s28]
    %s31 = sshllo.u32 0, 1
    %32 = vst [vmem:[%s1] sm:%s31] %v30

// kernel: tile.35
$region0: #{tile.35}
  #allocation0 [shape = 's32[1]{0}', space=sflag, size = 0x4, scoped, tag = 'scoped memory for tile.35']
  %s0 = inlined_call_operand.vmem [shape: f32[64], index: 0, kind: input, shape index: {}]
  %s1 = inlined_call_operand.vmem [shape: f32[2,64], index: 1, kind: output, shape index: {}]
  // Predicated region
  $region2: #{tile.35} parent=0 // pred_check
    _
  $region3: #{tile.35} parent=0 // pred_check_branch
    %3 = sbr.rel (0) target = $region5
  $region4: #{tile.35} parent=0 // pred_region
    _
  $region5: #{tile.35} parent=0 // pred_fallthru
    _
  %v4 = vld [vmem:[%s0] ss:$0 sm:$0xff]
  %5 = vst [vmem:[%s1] sm:$0x3] %v4

// kernel: tile.36
$region0: #{tile.36}
  %s0 = inlined_call_operand.vmem [shape: f32[2,64], index: 0, kind: input, shape index: {}]
  %s1 = inlined_call_operand.vmem [shape: f32[1,128], index: 1, kind: output, shape index: {}]
  $region1: #{tile.36} parent=0
    #allocation0 [shape = 'u8[4096]{0}', space=vmem, size = 0x1000, scoped, tag = 'scoped mem for output reshape']
    #allocation1 [shape = 'u8[4096]{0}', space=vmem, size = 0x1000, scoped, tag = 'scoped mem for input reshape']
    %s3 = sshllo.u32 0, 2
    %v4 = vld [vmem:[%s0] sm:%s3]
    %5 = vst [vmem:[#allocation1] sm:%s3] %v4
    %v6 = vld [vmem:[#allocation1] sm:$0x1]
    %vm7 = vcmask 523264
    %8 = vst.msk [vmem:[#allocation0] sm:$0x1] %vm7, %v6
    %s9 = scalar_lea.vmem [#allocation1], 1
    %v10 = vld [vmem:[%s9] sm:$0x1]
    %11 = vrot.lane.b32.xlu0 %v10, 64
    %v12 = vpop.permute.xlu0 %11
    %vm13 = vcmask 1048064
    %14 = vst.msk [vmem:[#allocation0] sm:$0x1] %vm13, %v12
    %s16 = sshllo.u32 0, 1
    %v18 = vld [vmem:[#allocation0] sm:%s16]
    %s19 = sshllo.u32 0, 1
    %20 = vst [vmem:[%s1] sm:%s19] %v18

// kernel: discriminator_forward.1
$region0: #{discriminator_forward.1}
  #allocation0 [shape = 'u32[]', space=smem, size = 0x4, offset = 0x4, fixed_abs, tag = 'smem constant byte address 0x4 - core index']
  #allocation1 [shape = 'u32[144,128]{1,0:T(1,128)}', space=vmem, size = 0x12000, scoped, tag = 'internal scratch']
  %s0 = inlined_call_operand.vmem [shape: bf16[16,2,64], index: 0, kind: input, shape index: {}]
  %s1 = inlined_call_operand.vmem [shape: bf16[256,128], index: 1, kind: input, shape index: {}]
  %s2 = inlined_call_operand.vmem [shape: bf16[512,128], index: 2, kind: input, shape index: {}]
  %s3 = inlined_call_operand.vmem [shape: bf16[512,128], index: 3, kind: input, shape index: {}]
  %s4 = inlined_call_operand.vmem [shape: bf16[512,128], index: 4, kind: input, shape index: {}]
  %s5 = inlined_call_operand.vmem [shape: f32[1,128], index: 5, kind: input, shape index: {}]
  %s6 = inlined_call_operand.vmem [shape: f32[1,128], index: 6, kind: input, shape index: {}]
  %s7 = inlined_call_operand.vmem [shape: f32[1,128], index: 7, kind: input, shape index: {}]
  %s8 = inlined_call_operand.vmem [shape: f32[1,128], index: 8, kind: input, shape index: {}]
  %s9 = inlined_call_operand.vmem [shape: f32[1,128], index: 9, kind: input, shape index: {}]
  %s10 = inlined_call_operand.vmem [shape: f32[1,128], index: 10, kind: input, shape index: {}]
  %s11 = inlined_call_operand.vmem [shape: f32[1,128], index: 11, kind: input, shape index: {}]
  %s12 = inlined_call_operand.vmem [shape: f32[2,256], index: 12, kind: output, shape index: {}]
  %s13 = sld [smem:[#allocation0]]
  $region58: #{discriminator_forward.1} parent=0
    _
  %s15 = ssub.s32 1, %s13
  %s16 = scalar_select 0, %s15, %s13
  // Predicated region
  $region2: #{discriminator_forward.1} parent=0 // pred_check
    _
  $region3: #{discriminator_forward.1} parent=0 // pred_check_branch
    %18 = sbr.rel (0) target = $region5
  $region4: #{discriminator_forward.1} parent=0 // pred_region
    _
  $region5: #{discriminator_forward.1} parent=0 // pred_fallthru
    _
  // Predicated region
  $region6: #{discriminator_forward.1} parent=0 // pred_check
    _
  $region7: #{discriminator_forward.1} parent=0 // pred_check_branch
    %20 = sbr.rel (0) target = $region9
  $region8: #{discriminator_forward.1} parent=0 // pred_region
    _
  $region9: #{discriminator_forward.1} parent=0 // pred_fallthru
    _
  // Predicated region
  $region10: #{discriminator_forward.1} parent=0 // pred_check
    _
  $region11: #{discriminator_forward.1} parent=0 // pred_check_branch
    %22 = sbr.rel (0) target = $region13
  $region12: #{discriminator_forward.1} parent=0 // pred_region
    _
  $region13: #{discriminator_forward.1} parent=0 // pred_fallthru
    _
  // Predicated region
  $region14: #{discriminator_forward.1} parent=0 // pred_check
    _
  $region15: #{discriminator_forward.1} parent=0 // pred_check_branch
    %24 = sbr.rel (0) target = $region17
  $region16: #{discriminator_forward.1} parent=0 // pred_region
    _
  $region17: #{discriminator_forward.1} parent=0 // pred_fallthru
    _
  // Predicated region
  $region18: #{discriminator_forward.1} parent=0 // pred_check
    _
  $region19: #{discriminator_forward.1} parent=0 // pred_check_branch
    %26 = sbr.rel (0) target = $region21
  $region20: #{discriminator_forward.1} parent=0 // pred_region
    _
  $region21: #{discriminator_forward.1} parent=0 // pred_fallthru
    _
  // Predicated region
  $region22: #{discriminator_forward.1} parent=0 // pred_check
    _
  $region23: #{discriminator_forward.1} parent=0 // pred_check_branch
    %28 = sbr.rel (0) target = $region25
  $region24: #{discriminator_forward.1} parent=0 // pred_region
    _
  $region25: #{discriminator_forward.1} parent=0 // pred_fallthru
    _
  // Predicated region
  $region26: #{discriminator_forward.1} parent=0 // pred_check
    _
  $region27: #{discriminator_forward.1} parent=0 // pred_check_branch
    %30 = sbr.rel (0) target = $region29
  $region28: #{discriminator_forward.1} parent=0 // pred_region
    _
  $region29: #{discriminator_forward.1} parent=0 // pred_fallthru
    _
  // Predicated region
  $region30: #{discriminator_forward.1} parent=0 // pred_check
    _
  $region31: #{discriminator_forward.1} parent=0 // pred_check_branch
    %32 = sbr.rel (0) target = $region33
  $region32: #{discriminator_forward.1} parent=0 // pred_region
    _
  $region33: #{discriminator_forward.1} parent=0 // pred_fallthru
    _
  // Predicated region
  $region34: #{discriminator_forward.1} parent=0 // pred_check
    _
  $region35: #{discriminator_forward.1} parent=0 // pred_check_branch
    %34 = sbr.rel (0) target = $region37
  $region36: #{discriminator_forward.1} parent=0 // pred_region
    _
  $region37: #{discriminator_forward.1} parent=0 // pred_fallthru
    _
  // Predicated region
  $region38: #{discriminator_forward.1} parent=0 // pred_check
    _
  $region39: #{discriminator_forward.1} parent=0 // pred_check_branch
    %36 = sbr.rel (0) target = $region41
  $region40: #{discriminator_forward.1} parent=0 // pred_region
    _
  $region41: #{discriminator_forward.1} parent=0 // pred_fallthru
    _
  // Predicated region
  $region42: #{discriminator_forward.1} parent=0 // pred_check
    _
  $region43: #{discriminator_forward.1} parent=0 // pred_check_branch
    %38 = sbr.rel (0) target = $region45
  $region44: #{discriminator_forward.1} parent=0 // pred_region
    _
  $region45: #{discriminator_forward.1} parent=0 // pred_fallthru
    _
  // Predicated region
  $region46: #{discriminator_forward.1} parent=0 // pred_check
    _
  $region47: #{discriminator_forward.1} parent=0 // pred_check_branch
    %40 = sbr.rel (0) target = $region49
  $region48: #{discriminator_forward.1} parent=0 // pred_region
    _
  $region49: #{discriminator_forward.1} parent=0 // pred_fallthru
    _
  %v42 = vld [vmem:[%s0] sm:$0x1]
  %s43 = scalar_lea.vmem %s0, 1
  %v44 = vld [vmem:[%s43] sm:$0x1]
  %s45 = scalar_lea.vmem %s0, 2
  %v46 = vld [vmem:[%s45] sm:$0x1]
  %s47 = scalar_lea.vmem %s0, 3
  %v48 = vld [vmem:[%s47] sm:$0x1]
  %s49 = scalar_lea.vmem %s0, 4
  %v50 = vld [vmem:[%s49] sm:$0x1]
  %s51 = scalar_lea.vmem %s0, 5
  %v52 = vld [vmem:[%s51] sm:$0x1]
  %s53 = scalar_lea.vmem %s0, 6
  %v54 = vld [vmem:[%s53] sm:$0x1]
  %s55 = scalar_lea.vmem %s0, 7
  %v56 = vld [vmem:[%s55] sm:$0x1]
  %s57 = scalar_lea.vmem %s0, 8
  %v58 = vld [vmem:[%s57] sm:$0x1]
  %s59 = scalar_lea.vmem %s0, 9
  %v60 = vld [vmem:[%s59] sm:$0x1]
  %s61 = scalar_lea.vmem %s0, 10
  %v62 = vld [vmem:[%s61] sm:$0x1]
  %s63 = scalar_lea.vmem %s0, 11
  %v64 = vld [vmem:[%s63] sm:$0x1]
  %s65 = scalar_lea.vmem %s0, 12
  %v66 = vld [vmem:[%s65] sm:$0x1]
  %s67 = scalar_lea.vmem %s0, 13
  %v68 = vld [vmem:[%s67] sm:$0x1]
  %s69 = scalar_lea.vmem %s0, 14
  %v70 = vld [vmem:[%s69] sm:$0x1]
  %s71 = scalar_lea.vmem %s0, 15
  %v72 = vld [vmem:[%s71] sm:$0x1]
  %v73 = vld [vmem:[%s1] sm:$0xf]
  %v74 = vld [vmem:[%s1 + $0x4] sm:$0xf]
  %v75 = vld [vmem:[%s1 + $0x8] sm:$0xf]
  %v76 = vld [vmem:[%s1 + $0xc] sm:$0xf]
  %v77 = vld [vmem:[%s1 + $0x10] sm:$0xf]
  %v78 = vld [vmem:[%s1 + $0x14] sm:$0xf]
  %v79 = vld [vmem:[%s1 + $0x18] sm:$0xf]
  %v80 = vld [vmem:[%s1 + $0x1c] sm:$0xf]
  %v81 = vld [vmem:[%s1 + $0x20] sm:$0xf]
  %v82 = vld [vmem:[%s1 + $0x24] sm:$0xf]
  %v83 = vld [vmem:[%s1 + $0x28] sm:$0xf]
  %v84 = vld [vmem:[%s1 + $0x2c] sm:$0xf]
  %v85 = vld [vmem:[%s1 + $0x30] sm:$0xf]
  %v86 = vld [vmem:[%s1 + $0x34] sm:$0xf]
  %v87 = vld [vmem:[%s1 + $0x38] sm:$0xf]
  %v88 = vld [vmem:[%s1 + $0x3c] sm:$0xf]
  %v89 = vld [vmem:[%s1 + $0x40] sm:$0xf]
  %v90 = vld [vmem:[%s1 + $0x44] sm:$0xf]
  %v91 = vld [vmem:[%s1 + $0x48] sm:$0xf]
  %v92 = vld [vmem:[%s1 + $0x4c] sm:$0xf]
  %v93 = vld [vmem:[%s1 + $0x50] sm:$0xf]
  %v94 = vld [vmem:[%s1 + $0x54] sm:$0xf]
  %v95 = vld [vmem:[%s1 + $0x58] sm:$0xf]
  %v96 = vld [vmem:[%s1 + $0x5c] sm:$0xf]
  %v97 = vld [vmem:[%s1 + $0x60] sm:$0xf]
  %v98 = vld [vmem:[%s1 + $0x64] sm:$0xf]
  %v99 = vld [vmem:[%s1 + $0x68] sm:$0xf]
  %v100 = vld [vmem:[%s1 + $0x6c] sm:$0xf]
  %v101 = vld [vmem:[%s1 + $0x70] sm:$0xf]
  %v102 = vld [vmem:[%s1 + $0x74] sm:$0xf]
  %v103 = vld [vmem:[%s1 + $0x78] sm:$0xf]
  %v104 = vld [vmem:[%s1 + $0x7c] sm:$0xf]
  %v107 = vunpack.c.l.s4 1966171168
  %v108 = vunpack.c.0.s8 %v107
  %v109 = vlaneseq
  %v110 = vshrl.u32 %v109, 7
  %v111 = vsub.s32 %v108, %v110
  %v112 = vrot.slane %v42, %v111
  %v114 = vunpack.c.l.s4 1966171168
  %v115 = vunpack.c.0.s8 %v114
  %v116 = vlaneseq
  %v117 = vshrl.u32 %v116, 7
  %v118 = vsub.s32 %v115, %v117
  %v119 = vrot.slane %v112, %v118
  %120 = vrot.lane.b32.xlu0 %v119, 64
  %v121 = vpop.permute.xlu0 %120
  %v124 = vunpack.c.l.s4 1966171168
  %v125 = vunpack.c.0.s8 %v124
  %v126 = vlaneseq
  %v127 = vshrl.u32 %v126, 7
  %v128 = vsub.s32 %v125, %v127
  %v129 = vrot.slane %v46, %v128
  %v131 = vunpack.c.l.s4 1966171168
  %v132 = vunpack.c.0.s8 %v131
  %v133 = vlaneseq
  %v134 = vshrl.u32 %v133, 7
  %v135 = vsub.s32 %v132, %v134
  %v136 = vrot.slane %v129, %v135
  %137 = vrot.lane.b32.xlu0 %v136, 64
  %v138 = vpop.permute.xlu0 %137
  %vm139 = vcmask 523264
  %v142 = vsel %vm139, 0, %v121
  %v146 = vsel %vm139, %v44, %v138
  %v180 = vunpack.c.l.b16 %v73
  %v181 = vunpack.c.l.b16 %v74
  %v182 = vunpack.c.l.b16 %v75
  %v183 = vunpack.c.l.b16 %v76
  %v184 = vunpack.c.l.b16 %v77
  %v185 = vunpack.c.l.b16 %v78
  %v186 = vunpack.c.l.b16 %v79
  %v187 = vunpack.c.l.b16 %v80
  %v188 = vunpack.c.l.b16 %v81
  %v189 = vunpack.c.l.b16 %v82
  %v190 = vunpack.c.l.b16 %v83
  %v191 = vunpack.c.l.b16 %v84
  %v192 = vunpack.c.l.b16 %v85
  %v193 = vunpack.c.l.b16 %v86
  %v194 = vunpack.c.l.b16 %v87
  %v195 = vunpack.c.l.b16 %v88
  %v196 = vunpack.c.l.b16 %v89
  %v197 = vunpack.c.l.b16 %v90
  %v198 = vunpack.c.l.b16 %v91
  %v199 = vunpack.c.l.b16 %v92
  %v200 = vunpack.c.l.b16 %v93
  %v201 = vunpack.c.l.b16 %v94
  %v202 = vunpack.c.l.b16 %v95
  %v203 = vunpack.c.l.b16 %v96
  %v204 = vunpack.c.l.b16 %v97
  %v205 = vunpack.c.l.b16 %v98
  %v206 = vunpack.c.l.b16 %v99
  %v207 = vunpack.c.l.b16 %v100
  %v208 = vunpack.c.l.b16 %v101
  %v209 = vunpack.c.l.b16 %v102
  %v210 = vunpack.c.l.b16 %v103
  %v211 = vunpack.c.l.b16 %v104
  %v212 = vpack.c.b16 %v181, %v180
  %v213 = vpack.c.b16 %v183, %v182
  %v214 = vpack.c.b16 %v185, %v184
  %v215 = vpack.c.b16 %v187, %v186
  %v216 = vpack.c.b16 %v189, %v188
  %v217 = vpack.c.b16 %v191, %v190
  %v218 = vpack.c.b16 %v193, %v192
  %v219 = vpack.c.b16 %v195, %v194
  %v220 = vpack.c.b16 %v197, %v196
  %v221 = vpack.c.b16 %v199, %v198
  %v222 = vpack.c.b16 %v201, %v200
  %v223 = vpack.c.b16 %v203, %v202
  %v224 = vpack.c.b16 %v205, %v204
  %v225 = vpack.c.b16 %v207, %v206
  %v226 = vpack.c.b16 %v209, %v208
  %v227 = vpack.c.b16 %v211, %v210
  %244 = vmatprep.subr.bf16.mxu0 0
  %245 = vmatpush1.bf16.msra.mxu0 %v212
  %246 = vmatprep.subr.bf16.mxu0 0
  %247 = vmatpush1.bf16.msra.mxu0 %v213
  %248 = vmatprep.subr.bf16.mxu0 0
  %249 = vmatpush1.bf16.msra.mxu0 %v214
  %250 = vmatprep.subr.bf16.mxu0 0
  %251 = vmatpush1.bf16.msra.mxu0 %v215
  %252 = vmatprep.subr.bf16.mxu0 0
  %253 = vmatpush1.bf16.msra.mxu0 %v216
  %254 = vmatprep.subr.bf16.mxu0 0
  %255 = vmatpush1.bf16.msra.mxu0 %v217
  %256 = vmatprep.subr.bf16.mxu0 0
  %257 = vmatpush1.bf16.msra.mxu0 %v218
  %258 = vmatprep.subr.bf16.mxu0 0
  %259 = vmatpush1.bf16.msra.mxu0 %v219
  %260 = vmatprep.subr.bf16.mxu0 0
  %261 = vmatpush1.bf16.msra.mxu0 %v220
  %262 = vmatprep.subr.bf16.mxu0 0
  %263 = vmatpush1.bf16.msra.mxu0 %v221
  %264 = vmatprep.subr.bf16.mxu0 0
  %265 = vmatpush1.bf16.msra.mxu0 %v222
  %266 = vmatprep.subr.bf16.mxu0 0
  %267 = vmatpush1.bf16.msra.mxu0 %v223
  %268 = vmatprep.subr.bf16.mxu0 0
  %269 = vmatpush1.bf16.msra.mxu0 %v224
  %270 = vmatprep.subr.bf16.mxu0 0
  %271 = vmatpush1.bf16.msra.mxu0 %v225
  %272 = vmatprep.subr.bf16.mxu0 0
  %273 = vmatpush1.bf16.msra.mxu0 %v226
  %274 = vmatprep.subr.bf16.mxu0 0
  %275 = vmatpush1.bf16.msra.mxu0 %v227
  %276 = vmatprep.mubr.bf16.mxu0 %v146
  %277 = vmatmul.mubr.bf16.gmra.mrb[0].mxu0 %v142
  %v278 = vpop.f32.mrb[0].mxu0
  %v279 = vadd.f32 0.0, %v278
  %v280 = vpop.f32.mrb[0].mxu0
  %v281 = vpop.f32.mrb[0].mxu0
  %v282 = vpop.f32.mrb[0].mxu0
  %283 = vdwg.mxu0
  %v286 = vunpack.c.l.s4 1966171168
  %v287 = vunpack.c.0.s8 %v286
  %v288 = vlaneseq
  %v289 = vshrl.u32 %v288, 7
  %v290 = vsub.s32 %v287, %v289
  %v291 = vrot.slane %v50, %v290
  %v293 = vunpack.c.l.s4 1966171168
  %v294 = vunpack.c.0.s8 %v293
  %v295 = vlaneseq
  %v296 = vshrl.u32 %v295, 7
  %v297 = vsub.s32 %v294, %v296
  %v298 = vrot.slane %v291, %v297
  %299 = vrot.lane.b32.xlu0 %v298, 64
  %v300 = vpop.permute.xlu0 %299
  %v303 = vsel %vm139, %v48, %v300
  %305 = vmatprep.subr.bf16.mxu0 0
  %306 = vmatpush1.bf16.msra.mxu0 %v212
  %307 = vmatprep.subr.bf16.mxu0 0
  %308 = vmatpush1.bf16.msra.mxu0 %v213
  %309 = vmatprep.subr.bf16.mxu0 0
  %310 = vmatpush1.bf16.msra.mxu0 %v214
  %311 = vmatprep.subr.bf16.mxu0 0
  %312 = vmatpush1.bf16.msra.mxu0 %v215
  %313 = vmatprep.subr.bf16.mxu0 0
  %314 = vmatpush1.bf16.msra.mxu0 %v216
  %315 = vmatprep.subr.bf16.mxu0 0
  %316 = vmatpush1.bf16.msra.mxu0 %v217
  %317 = vmatprep.subr.bf16.mxu0 0
  %318 = vmatpush1.bf16.msra.mxu0 %v218
  %319 = vmatprep.subr.bf16.mxu0 0
  %320 = vmatpush1.bf16.msra.mxu0 %v219
  %321 = vmatprep.subr.bf16.mxu0 0
  %322 = vmatpush1.bf16.msra.mxu0 %v220
  %323 = vmatprep.subr.bf16.mxu0 0
  %324 = vmatpush1.bf16.msra.mxu0 %v221
  %325 = vmatprep.subr.bf16.mxu0 0
  %326 = vmatpush1.bf16.msra.mxu0 %v222
  %327 = vmatprep.subr.bf16.mxu0 0
  %328 = vmatpush1.bf16.msra.mxu0 %v223
  %329 = vmatprep.subr.bf16.mxu0 0
  %330 = vmatpush1.bf16.msra.mxu0 %v224
  %331 = vmatprep.subr.bf16.mxu0 0
  %332 = vmatpush1.bf16.msra.mxu0 %v225
  %333 = vmatprep.subr.bf16.mxu0 0
  %334 = vmatpush1.bf16.msra.mxu0 %v226
  %335 = vmatprep.subr.bf16.mxu0 0
  %336 = vmatpush1.bf16.msra.mxu0 %v227
  %337 = vmatprep.mubr.bf16.mxu0 %v303
  %338 = vmatmul.mubr.bf16.gmra.mrb[0].mxu0 %v146
  %v339 = vpop.f32.mrb[0].mxu0
  %v340 = vadd.f32 0.0, %v339
  %v341 = vpop.f32.mrb[0].mxu0
  %v342 = vpop.f32.mrb[0].mxu0
  %v343 = vpop.f32.mrb[0].mxu0
  %344 = vdwg.mxu0
  %v347 = vunpack.c.l.s4 1966171168
  %v348 = vunpack.c.0.s8 %v347
  %v349 = vlaneseq
  %v350 = vshrl.u32 %v349, 7
  %v351 = vsub.s32 %v348, %v350
  %v352 = vrot.slane %v54, %v351
  %v354 = vunpack.c.l.s4 1966171168
  %v355 = vunpack.c.0.s8 %v354
  %v356 = vlaneseq
  %v357 = vshrl.u32 %v356, 7
  %v358 = vsub.s32 %v355, %v357
  %v359 = vrot.slane %v352, %v358
  %360 = vrot.lane.b32.xlu0 %v359, 64
  %v361 = vpop.permute.xlu0 %360
  %v364 = vsel %vm139, %v52, %v361
  %366 = vmatprep.subr.bf16.mxu0 0
  %367 = vmatpush1.bf16.msra.mxu0 %v212
  %368 = vmatprep.subr.bf16.mxu0 0
  %369 = vmatpush1.bf16.msra.mxu0 %v213
  %370 = vmatprep.subr.bf16.mxu0 0
  %371 = vmatpush1.bf16.msra.mxu0 %v214
  %372 = vmatprep.subr.bf16.mxu0 0
  %373 = vmatpush1.bf16.msra.mxu0 %v215
  %374 = vmatprep.subr.bf16.mxu0 0
  %375 = vmatpush1.bf16.msra.mxu0 %v216
  %376 = vmatprep.subr.bf16.mxu0 0
  %377 = vmatpush1.bf16.msra.mxu0 %v217
  %378 = vmatprep.subr.bf16.mxu0 0
  %379 = vmatpush1.bf16.msra.mxu0 %v218
  %380 = vmatprep.subr.bf16.mxu0 0
  %381 = vmatpush1.bf16.msra.mxu0 %v219
  %382 = vmatprep.subr.bf16.mxu0 0
  %383 = vmatpush1.bf16.msra.mxu0 %v220
  %384 = vmatprep.subr.bf16.mxu0 0
  %385 = vmatpush1.bf16.msra.mxu0 %v221
  %386 = vmatprep.subr.bf16.mxu0 0
  %387 = vmatpush1.bf16.msra.mxu0 %v222
  %388 = vmatprep.subr.bf16.mxu0 0
  %389 = vmatpush1.bf16.msra.mxu0 %v223
  %390 = vmatprep.subr.bf16.mxu0 0
  %391 = vmatpush1.bf16.msra.mxu0 %v224
  %392 = vmatprep.subr.bf16.mxu0 0
  %393 = vmatpush1.bf16.msra.mxu0 %v225
  %394 = vmatprep.subr.bf16.mxu0 0
  %395 = vmatpush1.bf16.msra.mxu0 %v226
  %396 = vmatprep.subr.bf16.mxu0 0
  %397 = vmatpush1.bf16.msra.mxu0 %v227
  %398 = vmatprep.mubr.bf16.mxu0 %v364
  %399 = vmatmul.mubr.bf16.gmra.mrb[0].mxu0 %v303
  %v400 = vpop.f32.mrb[0].mxu0
  %v401 = vadd.f32 0.0, %v400
  %v402 = vpop.f32.mrb[0].mxu0
  %v403 = vpop.f32.mrb[0].mxu0
  %v404 = vpop.f32.mrb[0].mxu0
  %405 = vdwg.mxu0
  %v408 = vunpack.c.l.s4 1966171168
  %v409 = vunpack.c.0.s8 %v408
  %v410 = vlaneseq
  %v411 = vshrl.u32 %v410, 7
  %v412 = vsub.s32 %v409, %v411
  %v413 = vrot.slane %v58, %v412
  %v415 = vunpack.c.l.s4 1966171168
  %v416 = vunpack.c.0.s8 %v415
  %v417 = vlaneseq
  %v418 = vshrl.u32 %v417, 7
  %v419 = vsub.s32 %v416, %v418
  %v420 = vrot.slane %v413, %v419
  %421 = vrot.lane.b32.xlu0 %v420, 64
  %v422 = vpop.permute.xlu0 %421
  %v425 = vsel %vm139, %v56, %v422
  %427 = vmatprep.subr.bf16.mxu0 0
  %428 = vmatpush1.bf16.msra.mxu0 %v212
  %429 = vmatprep.subr.bf16.mxu0 0
  %430 = vmatpush1.bf16.msra.mxu0 %v213
  %431 = vmatprep.subr.bf16.mxu0 0
  %432 = vmatpush1.bf16.msra.mxu0 %v214
  %433 = vmatprep.subr.bf16.mxu0 0
  %434 = vmatpush1.bf16.msra.mxu0 %v215
  %435 = vmatprep.subr.bf16.mxu0 0
  %436 = vmatpush1.bf16.msra.mxu0 %v216
  %437 = vmatprep.subr.bf16.mxu0 0
  %438 = vmatpush1.bf16.msra.mxu0 %v217
  %439 = vmatprep.subr.bf16.mxu0 0
  %440 = vmatpush1.bf16.msra.mxu0 %v218
  %441 = vmatprep.subr.bf16.mxu0 0
  %442 = vmatpush1.bf16.msra.mxu0 %v219
  %443 = vmatprep.subr.bf16.mxu0 0
  %444 = vmatpush1.bf16.msra.mxu0 %v220
  %445 = vmatprep.subr.bf16.mxu0 0
  %446 = vmatpush1.bf16.msra.mxu0 %v221
  %447 = vmatprep.subr.bf16.mxu0 0
  %448 = vmatpush1.bf16.msra.mxu0 %v222
  %449 = vmatprep.subr.bf16.mxu0 0
  %450 = vmatpush1.bf16.msra.mxu0 %v223
  %451 = vmatprep.subr.bf16.mxu0 0
  %452 = vmatpush1.bf16.msra.mxu0 %v224
  %453 = vmatprep.subr.bf16.mxu0 0
  %454 = vmatpush1.bf16.msra.mxu0 %v225
  %455 = vmatprep.subr.bf16.mxu0 0
  %456 = vmatpush1.bf16.msra.mxu0 %v226
  %457 = vmatprep.subr.bf16.mxu0 0
  %458 = vmatpush1.bf16.msra.mxu0 %v227
  %459 = vmatprep.mubr.bf16.mxu0 %v425
  %460 = vmatmul.mubr.bf16.gmra.mrb[0].mxu0 %v364
  %v461 = vpop.f32.mrb[0].mxu0
  %v462 = vadd.f32 0.0, %v461
  %v463 = vpop.f32.mrb[0].mxu0
  %v464 = vpop.f32.mrb[0].mxu0
  %v465 = vpop.f32.mrb[0].mxu0
  %466 = vdwg.mxu0
  %v469 = vunpack.c.l.s4 1966171168
  %v470 = vunpack.c.0.s8 %v469
  %v471 = vlaneseq
  %v472 = vshrl.u32 %v471, 7
  %v473 = vsub.s32 %v470, %v472
  %v474 = vrot.slane %v62, %v473
  %v476 = vunpack.c.l.s4 1966171168
  %v477 = vunpack.c.0.s8 %v476
  %v478 = vlaneseq
  %v479 = vshrl.u32 %v478, 7
  %v480 = vsub.s32 %v477, %v479
  %v481 = vrot.slane %v474, %v480
  %482 = vrot.lane.b32.xlu0 %v481, 64
  %v483 = vpop.permute.xlu0 %482
  %v486 = vsel %vm139, %v60, %v483
  %488 = vmatprep.subr.bf16.mxu0 0
  %489 = vmatpush1.bf16.msra.mxu0 %v212
  %490 = vmatprep.subr.bf16.mxu0 0
  %491 = vmatpush1.bf16.msra.mxu0 %v213
  %492 = vmatprep.subr.bf16.mxu0 0
  %493 = vmatpush1.bf16.msra.mxu0 %v214
  %494 = vmatprep.subr.bf16.mxu0 0
  %495 = vmatpush1.bf16.msra.mxu0 %v215
  %496 = vmatprep.subr.bf16.mxu0 0
  %497 = vmatpush1.bf16.msra.mxu0 %v216
  %498 = vmatprep.subr.bf16.mxu0 0
  %499 = vmatpush1.bf16.msra.mxu0 %v217
  %500 = vmatprep.subr.bf16.mxu0 0
  %501 = vmatpush1.bf16.msra.mxu0 %v218
  %502 = vmatprep.subr.bf16.mxu0 0
  %503 = vmatpush1.bf16.msra.mxu0 %v219
  %504 = vmatprep.subr.bf16.mxu0 0
  %505 = vmatpush1.bf16.msra.mxu0 %v220
  %506 = vmatprep.subr.bf16.mxu0 0
  %507 = vmatpush1.bf16.msra.mxu0 %v221
  %508 = vmatprep.subr.bf16.mxu0 0
  %509 = vmatpush1.bf16.msra.mxu0 %v222
  %510 = vmatprep.subr.bf16.mxu0 0
  %511 = vmatpush1.bf16.msra.mxu0 %v223
  %512 = vmatprep.subr.bf16.mxu0 0
  %513 = vmatpush1.bf16.msra.mxu0 %v224
  %514 = vmatprep.subr.bf16.mxu0 0
  %515 = vmatpush1.bf16.msra.mxu0 %v225
  %516 = vmatprep.subr.bf16.mxu0 0
  %517 = vmatpush1.bf16.msra.mxu0 %v226
  %518 = vmatprep.subr.bf16.mxu0 0
  %519 = vmatpush1.bf16.msra.mxu0 %v227
  %520 = vmatprep.mubr.bf16.mxu0 %v486
  %521 = vmatmul.mubr.bf16.gmra.mrb[0].mxu0 %v425
  %v522 = vpop.f32.mrb[0].mxu0
  %v523 = vadd.f32 0.0, %v522
  %v524 = vpop.f32.mrb[0].mxu0
  %v525 = vpop.f32.mrb[0].mxu0
  %v526 = vpop.f32.mrb[0].mxu0
  %527 = vdwg.mxu0
  %v530 = vunpack.c.l.s4 1966171168
  %v531 = vunpack.c.0.s8 %v530
  %v532 = vlaneseq
  %v533 = vshrl.u32 %v532, 7
  %v534 = vsub.s32 %v531, %v533
  %v535 = vrot.slane %v66, %v534
  %v537 = vunpack.c.l.s4 1966171168
  %v538 = vunpack.c.0.s8 %v537
  %v539 = vlaneseq
  %v540 = vshrl.u32 %v539, 7
  %v541 = vsub.s32 %v538, %v540
  %v542 = vrot.slane %v535, %v541
  %543 = vrot.lane.b32.xlu0 %v542, 64
  %v544 = vpop.permute.xlu0 %543
  %v547 = vsel %vm139, %v64, %v544
  %549 = vmatprep.subr.bf16.mxu0 0
  %550 = vmatpush1.bf16.msra.mxu0 %v212
  %551 = vmatprep.subr.bf16.mxu0 0
  %552 = vmatpush1.bf16.msra.mxu0 %v213
  %553 = vmatprep.subr.bf16.mxu0 0
  %554 = vmatpush1.bf16.msra.mxu0 %v214
  %555 = vmatprep.subr.bf16.mxu0 0
  %556 = vmatpush1.bf16.msra.mxu0 %v215
  %557 = vmatprep.subr.bf16.mxu0 0
  %558 = vmatpush1.bf16.msra.mxu0 %v216
  %559 = vmatprep.subr.bf16.mxu0 0
  %560 = vmatpush1.bf16.msra.mxu0 %v217
  %561 = vmatprep.subr.bf16.mxu0 0
  %562 = vmatpush1.bf16.msra.mxu0 %v218
  %563 = vmatprep.subr.bf16.mxu0 0
  %564 = vmatpush1.bf16.msra.mxu0 %v219
  %565 = vmatprep.subr.bf16.mxu0 0
  %566 = vmatpush1.bf16.msra.mxu0 %v220
  %567 = vmatprep.subr.bf16.mxu0 0
  %568 = vmatpush1.bf16.msra.mxu0 %v221
  %569 = vmatprep.subr.bf16.mxu0 0
  %570 = vmatpush1.bf16.msra.mxu0 %v222
  %571 = vmatprep.subr.bf16.mxu0 0
  %572 = vmatpush1.bf16.msra.mxu0 %v223
  %573 = vmatprep.subr.bf16.mxu0 0
  %574 = vmatpush1.bf16.msra.mxu0 %v224
  %575 = vmatprep.subr.bf16.mxu0 0
  %576 = vmatpush1.bf16.msra.mxu0 %v225
  %577 = vmatprep.subr.bf16.mxu0 0
  %578 = vmatpush1.bf16.msra.mxu0 %v226
  %579 = vmatprep.subr.bf16.mxu0 0
  %580 = vmatpush1.bf16.msra.mxu0 %v227
  %581 = vmatprep.mubr.bf16.mxu0 %v547
  %582 = vmatmul.mubr.bf16.gmra.mrb[0].mxu0 %v486
  %v583 = vpop.f32.mrb[0].mxu0
  %v584 = vadd.f32 0.0, %v583
  %v585 = vpop.f32.mrb[0].mxu0
  %v586 = vpop.f32.mrb[0].mxu0
  %v587 = vpop.f32.mrb[0].mxu0
  %588 = vdwg.mxu0
  %v591 = vunpack.c.l.s4 1966171168
  %v592 = vunpack.c.0.s8 %v591
  %v593 = vlaneseq
  %v594 = vshrl.u32 %v593, 7
  %v595 = vsub.s32 %v592, %v594
  %v596 = vrot.slane %v70, %v595
  %v598 = vunpack.c.l.s4 1966171168
  %v599 = vunpack.c.0.s8 %v598
  %v600 = vlaneseq
  %v601 = vshrl.u32 %v600, 7
  %v602 = vsub.s32 %v599, %v601
  %v603 = vrot.slane %v596, %v602
  %604 = vrot.lane.b32.xlu0 %v603, 64
  %v605 = vpop.permute.xlu0 %604
  %v608 = vsel %vm139, %v68, %v605
  %610 = vmatprep.subr.bf16.mxu0 0
  %611 = vmatpush1.bf16.msra.mxu0 %v212
  %612 = vmatprep.subr.bf16.mxu0 0
  %613 = vmatpush1.bf16.msra.mxu0 %v213
  %614 = vmatprep.subr.bf16.mxu0 0
  %615 = vmatpush1.bf16.msra.mxu0 %v214
  %616 = vmatprep.subr.bf16.mxu0 0
  %617 = vmatpush1.bf16.msra.mxu0 %v215
  %618 = vmatprep.subr.bf16.mxu0 0
  %619 = vmatpush1.bf16.msra.mxu0 %v216
  %620 = vmatprep.subr.bf16.mxu0 0
  %621 = vmatpush1.bf16.msra.mxu0 %v217
  %622 = vmatprep.subr.bf16.mxu0 0
  %623 = vmatpush1.bf16.msra.mxu0 %v218
  %624 = vmatprep.subr.bf16.mxu0 0
  %625 = vmatpush1.bf16.msra.mxu0 %v219
  %626 = vmatprep.subr.bf16.mxu0 0
  %627 = vmatpush1.bf16.msra.mxu0 %v220
  %628 = vmatprep.subr.bf16.mxu0 0
  %629 = vmatpush1.bf16.msra.mxu0 %v221
  %630 = vmatprep.subr.bf16.mxu0 0
  %631 = vmatpush1.bf16.msra.mxu0 %v222
  %632 = vmatprep.subr.bf16.mxu0 0
  %633 = vmatpush1.bf16.msra.mxu0 %v223
  %634 = vmatprep.subr.bf16.mxu0 0
  %635 = vmatpush1.bf16.msra.mxu0 %v224
  %636 = vmatprep.subr.bf16.mxu0 0
  %637 = vmatpush1.bf16.msra.mxu0 %v225
  %638 = vmatprep.subr.bf16.mxu0 0
  %639 = vmatpush1.bf16.msra.mxu0 %v226
  %640 = vmatprep.subr.bf16.mxu0 0
  %641 = vmatpush1.bf16.msra.mxu0 %v227
  %642 = vmatprep.mubr.bf16.mxu0 %v608
  %643 = vmatmul.mubr.bf16.gmra.mrb[0].mxu0 %v547
  %v644 = vpop.f32.mrb[0].mxu0
  %v645 = vadd.f32 0.0, %v644
  %v646 = vpop.f32.mrb[0].mxu0
  %v647 = vpop.f32.mrb[0].mxu0
  %v648 = vpop.f32.mrb[0].mxu0
  %649 = vdwg.mxu0
  %v651 = vsel %vm139, %v72, 0
  %653 = vmatprep.subr.bf16.mxu0 0
  %654 = vmatpush1.bf16.msra.mxu0 %v212
  %655 = vmatprep.subr.bf16.mxu0 0
  %656 = vmatpush1.bf16.msra.mxu0 %v213
  %657 = vmatprep.subr.bf16.mxu0 0
  %658 = vmatpush1.bf16.msra.mxu0 %v214
  %659 = vmatprep.subr.bf16.mxu0 0
  %660 = vmatpush1.bf16.msra.mxu0 %v215
  %661 = vmatprep.subr.bf16.mxu0 0
  %662 = vmatpush1.bf16.msra.mxu0 %v216
  %663 = vmatprep.subr.bf16.mxu0 0
  %664 = vmatpush1.bf16.msra.mxu0 %v217
  %665 = vmatprep.subr.bf16.mxu0 0
  %666 = vmatpush1.bf16.msra.mxu0 %v218
  %667 = vmatprep.subr.bf16.mxu0 0
  %668 = vmatpush1.bf16.msra.mxu0 %v219
  %669 = vmatprep.subr.bf16.mxu0 0
  %670 = vmatpush1.bf16.msra.mxu0 %v220
  %671 = vmatprep.subr.bf16.mxu0 0
  %672 = vmatpush1.bf16.msra.mxu0 %v221
  %673 = vmatprep.subr.bf16.mxu0 0
  %674 = vmatpush1.bf16.msra.mxu0 %v222
  %675 = vmatprep.subr.bf16.mxu0 0
  %676 = vmatpush1.bf16.msra.mxu0 %v223
  %677 = vmatprep.subr.bf16.mxu0 0
  %678 = vmatpush1.bf16.msra.mxu0 %v224
  %679 = vmatprep.subr.bf16.mxu0 0
  %680 = vmatpush1.bf16.msra.mxu0 %v225
  %681 = vmatprep.subr.bf16.mxu0 0
  %682 = vmatpush1.bf16.msra.mxu0 %v226
  %683 = vmatprep.subr.bf16.mxu0 0
  %684 = vmatpush1.bf16.msra.mxu0 %v227
  %685 = vmatprep.mubr.bf16.mxu0 %v651
  %686 = vmatmul.mubr.bf16.gmra.mrb[0].mxu0 %v608
  %v687 = vpop.f32.mrb[0].mxu0
  %v688 = vadd.f32 0.0, %v687
  %v689 = vpop.f32.mrb[0].mxu0
  %v690 = vpop.f32.mrb[0].mxu0
  %v691 = vpop.f32.mrb[0].mxu0
  %692 = vdwg.mxu0
  %vm693 = vcmp.ge.f32.partialorder %v279, 0.0
  %v694 = vmul.f32 %v279, 0.2
  %v695 = vsel %vm693, %v279, %v694
  %vm696 = vcmp.ge.f32.partialorder %v340, 0.0
  %v697 = vmul.f32 %v340, 0.2
  %v698 = vsel %vm696, %v340, %v697
  %vm699 = vcmp.ge.f32.partialorder %v401, 0.0
  %v700 = vmul.f32 %v401, 0.2
  %v701 = vsel %vm699, %v401, %v700
  %vm702 = vcmp.ge.f32.partialorder %v462, 0.0
  %v703 = vmul.f32 %v462, 0.2
  %v704 = vsel %vm702, %v462, %v703
  %vm705 = vcmp.ge.f32.partialorder %v523, 0.0
  %v706 = vmul.f32 %v523, 0.2
  %v707 = vsel %vm705, %v523, %v706
  %vm708 = vcmp.ge.f32.partialorder %v584, 0.0
  %v709 = vmul.f32 %v584, 0.2
  %v710 = vsel %vm708, %v584, %v709
  %vm711 = vcmp.ge.f32.partialorder %v645, 0.0
  %v712 = vmul.f32 %v645, 0.2
  %v713 = vsel %vm711, %v645, %v712
  %vm714 = vcmp.ge.f32.partialorder %v688, 0.0
  %v715 = vmul.f32 %v688, 0.2
  %v716 = vsel %vm714, %v688, %v715
  %v717 = vpack.c.bf16 %v695, %v695
  %v718 = vpack.c.bf16 %v698, %v698
  %v719 = vpack.c.bf16 %v701, %v701
  %v720 = vpack.c.bf16 %v704, %v704
  %v721 = vpack.c.bf16 %v707, %v707
  %v722 = vpack.c.bf16 %v710, %v710
  %v723 = vpack.c.bf16 %v713, %v713
  %v724 = vpack.c.bf16 %v716, %v716
  %v725 = vld [vmem:[%s2] sm:$0xf]
  %v726 = vld [vmem:[%s2 + $0x4] sm:$0xf]
  %v727 = vld [vmem:[%s2 + $0x8] sm:$0xf]
  %v728 = vld [vmem:[%s2 + $0xc] sm:$0xf]
  %v729 = vld [vmem:[%s2 + $0x10] sm:$0xf]
  %v730 = vld [vmem:[%s2 + $0x14] sm:$0xf]
  %v731 = vld [vmem:[%s2 + $0x18] sm:$0xf]
  %v732 = vld [vmem:[%s2 + $0x1c] sm:$0xf]
  %v733 = vld [vmem:[%s2 + $0x20] sm:$0xf]
  %v734 = vld [vmem:[%s2 + $0x24] sm:$0xf]
  %v735 = vld [vmem:[%s2 + $0x28] sm:$0xf]
  %v736 = vld [vmem:[%s2 + $0x2c] sm:$0xf]
  %v737 = vld [vmem:[%s2 + $0x30] sm:$0xf]
  %v738 = vld [vmem:[%s2 + $0x34] sm:$0xf]
  %v739 = vld [vmem:[%s2 + $0x38] sm:$0xf]
  %v740 = vld [vmem:[%s2 + $0x3c] sm:$0xf]
  %v741 = vld [vmem:[%s2 + $0x40] sm:$0xf]
  %v742 = vld [vmem:[%s2 + $0x44] sm:$0xf]
  %v743 = vld [vmem:[%s2 + $0x48] sm:$0xf]
  %v744 = vld [vmem:[%s2 + $0x4c] sm:$0xf]
  %v745 = vld [vmem:[%s2 + $0x50] sm:$0xf]
  %v746 = vld [vmem:[%s2 + $0x54] sm:$0xf]
  %v747 = vld [vmem:[%s2 + $0x58] sm:$0xf]
  %v748 = vld [vmem:[%s2 + $0x5c] sm:$0xf]
  %v749 = vld [vmem:[%s2 + $0x60] sm:$0xf]
  %v750 = vld [vmem:[%s2 + $0x64] sm:$0xf]
  %v751 = vld [vmem:[%s2 + $0x68] sm:$0xf]
  %v752 = vld [vmem:[%s2 + $0x6c] sm:$0xf]
  %v753 = vld [vmem:[%s2 + $0x70] sm:$0xf]
  %v754 = vld [vmem:[%s2 + $0x74] sm:$0xf]
  %v755 = vld [vmem:[%s2 + $0x78] sm:$0xf]
  %v756 = vld [vmem:[%s2 + $0x7c] sm:$0xf]
  %v757 = vld [vmem:[%s2 + $0x80] sm:$0xf]
  %v758 = vld [vmem:[%s2 + $0x84] sm:$0xf]
  %v759 = vld [vmem:[%s2 + $0x88] sm:$0xf]
  %v760 = vld [vmem:[%s2 + $0x8c] sm:$0xf]
  %v761 = vld [vmem:[%s2 + $0x90] sm:$0xf]
  %v762 = vld [vmem:[%s2 + $0x94] sm:$0xf]
  %v763 = vld [vmem:[%s2 + $0x98] sm:$0xf]
  %v764 = vld [vmem:[%s2 + $0x9c] sm:$0xf]
  %v765 = vld [vmem:[%s2 + $0xa0] sm:$0xf]
  %v766 = vld [vmem:[%s2 + $0xa4] sm:$0xf]
  %v767 = vld [vmem:[%s2 + $0xa8] sm:$0xf]
  %v768 = vld [vmem:[%s2 + $0xac] sm:$0xf]
  %v769 = vld [vmem:[%s2 + $0xb0] sm:$0xf]
  %v770 = vld [vmem:[%s2 + $0xb4] sm:$0xf]
  %v771 = vld [vmem:[%s2 + $0xb8] sm:$0xf]
  %v772 = vld [vmem:[%s2 + $0xbc] sm:$0xf]
  %v773 = vld [vmem:[%s2 + $0xc0] sm:$0xf]
  %v774 = vld [vmem:[%s2 + $0xc4] sm:$0xf]
  %v775 = vld [vmem:[%s2 + $0xc8] sm:$0xf]
  %v776 = vld [vmem:[%s2 + $0xcc] sm:$0xf]
  %v777 = vld [vmem:[%s2 + $0xd0] sm:$0xf]
  %v778 = vld [vmem:[%s2 + $0xd4] sm:$0xf]
  %v779 = vld [vmem:[%s2 + $0xd8] sm:$0xf]
  %v780 = vld [vmem:[%s2 + $0xdc] sm:$0xf]
  %v781 = vld [vmem:[%s2 + $0xe0] sm:$0xf]
  %v782 = vld [vmem:[%s2 + $0xe4] sm:$0xf]
  %v783 = vld [vmem:[%s2 + $0xe8] sm:$0xf]
  %v784 = vld [vmem:[%s2 + $0xec] sm:$0xf]
  %v785 = vld [vmem:[%s2 + $0xf0] sm:$0xf]
  %v786 = vld [vmem:[%s2 + $0xf4] sm:$0xf]
  %v787 = vld [vmem:[%s2 + $0xf8] sm:$0xf]
  %v788 = vld [vmem:[%s2 + $0xfc] sm:$0xf]
  %v853 = vunpack.c.l.b16 %v725
  %v854 = vunpack.c.l.b16 %v726
  %v855 = vunpack.c.l.b16 %v727
  %v856 = vunpack.c.l.b16 %v728
  %v857 = vunpack.c.l.b16 %v729
  %v858 = vunpack.c.l.b16 %v730
  %v859 = vunpack.c.l.b16 %v731
  %v860 = vunpack.c.l.b16 %v732
  %v861 = vunpack.c.l.b16 %v733
  %v862 = vunpack.c.l.b16 %v734
  %v863 = vunpack.c.l.b16 %v735
  %v864 = vunpack.c.l.b16 %v736
  %v865 = vunpack.c.l.b16 %v737
  %v866 = vunpack.c.l.b16 %v738
  %v867 = vunpack.c.l.b16 %v739
  %v868 = vunpack.c.l.b16 %v740
  %v869 = vunpack.c.l.b16 %v741
  %v870 = vunpack.c.l.b16 %v742
  %v871 = vunpack.c.l.b16 %v743
  %v872 = vunpack.c.l.b16 %v744
  %v873 = vunpack.c.l.b16 %v745
  %v874 = vunpack.c.l.b16 %v746
  %v875 = vunpack.c.l.b16 %v747
  %v876 = vunpack.c.l.b16 %v748
  %v877 = vunpack.c.l.b16 %v749
  %v878 = vunpack.c.l.b16 %v750
  %v879 = vunpack.c.l.b16 %v751
  %v880 = vunpack.c.l.b16 %v752
  %v881 = vunpack.c.l.b16 %v753
  %v882 = vunpack.c.l.b16 %v754
  %v883 = vunpack.c.l.b16 %v755
  %v884 = vunpack.c.l.b16 %v756
  %v885 = vunpack.c.l.b16 %v757
  %v886 = vunpack.c.l.b16 %v758
  %v887 = vunpack.c.l.b16 %v759
  %v888 = vunpack.c.l.b16 %v760
  %v889 = vunpack.c.l.b16 %v761
  %v890 = vunpack.c.l.b16 %v762
  %v891 = vunpack.c.l.b16 %v763
  %v892 = vunpack.c.l.b16 %v764
  %v893 = vunpack.c.l.b16 %v765
  %v894 = vunpack.c.l.b16 %v766
  %v895 = vunpack.c.l.b16 %v767
  %v896 = vunpack.c.l.b16 %v768
  %v897 = vunpack.c.l.b16 %v769
  %v898 = vunpack.c.l.b16 %v770
  %v899 = vunpack.c.l.b16 %v771
  %v900 = vunpack.c.l.b16 %v772
  %v901 = vunpack.c.l.b16 %v773
  %v902 = vunpack.c.l.b16 %v774
  %v903 = vunpack.c.l.b16 %v775
  %v904 = vunpack.c.l.b16 %v776
  %v905 = vunpack.c.l.b16 %v777
  %v906 = vunpack.c.l.b16 %v778
  %v907 = vunpack.c.l.b16 %v779
  %v908 = vunpack.c.l.b16 %v780
  %v909 = vunpack.c.l.b16 %v781
  %v910 = vunpack.c.l.b16 %v782
  %v911 = vunpack.c.l.b16 %v783
  %v912 = vunpack.c.l.b16 %v784
  %v913 = vunpack.c.l.b16 %v785
  %v914 = vunpack.c.l.b16 %v786
  %v915 = vunpack.c.l.b16 %v787
  %v916 = vunpack.c.l.b16 %v788
  %v917 = vpack.c.b16 %v854, %v853
  %v918 = vpack.c.b16 %v856, %v855
  %v919 = vpack.c.b16 %v858, %v857
  %v920 = vpack.c.b16 %v860, %v859
  %v921 = vpack.c.b16 %v862, %v861
  %v922 = vpack.c.b16 %v864, %v863
  %v923 = vpack.c.b16 %v866, %v865
  %v924 = vpack.c.b16 %v868, %v867
  %v925 = vpack.c.b16 %v870, %v869
  %v926 = vpack.c.b16 %v872, %v871
  %v927 = vpack.c.b16 %v874, %v873
  %v928 = vpack.c.b16 %v876, %v875
  %v929 = vpack.c.b16 %v878, %v877
  %v930 = vpack.c.b16 %v880, %v879
  %v931 = vpack.c.b16 %v882, %v881
  %v932 = vpack.c.b16 %v884, %v883
  %v933 = vpack.c.b16 %v886, %v885
  %v934 = vpack.c.b16 %v888, %v887
  %v935 = vpack.c.b16 %v890, %v889
  %v936 = vpack.c.b16 %v892, %v891
  %v937 = vpack.c.b16 %v894, %v893
  %v938 = vpack.c.b16 %v896, %v895
  %v939 = vpack.c.b16 %v898, %v897
  %v940 = vpack.c.b16 %v900, %v899
  %v941 = vpack.c.b16 %v902, %v901
  %v942 = vpack.c.b16 %v904, %v903
  %v943 = vpack.c.b16 %v906, %v905
  %v944 = vpack.c.b16 %v908, %v907
  %v945 = vpack.c.b16 %v910, %v909
  %v946 = vpack.c.b16 %v912, %v911
  %v947 = vpack.c.b16 %v914, %v913
  %v948 = vpack.c.b16 %v916, %v915
  %981 = vmatprep.subr.bf16.mxu0 0
  %982 = vmatpush1.bf16.msra.mxu0 %v917
  %983 = vmatprep.subr.bf16.mxu0 0
  %984 = vmatpush1.bf16.msra.mxu0 %v918
  %985 = vmatprep.subr.bf16.mxu0 0
  %986 = vmatpush1.bf16.msra.mxu0 %v919
  %987 = vmatprep.subr.bf16.mxu0 0
  %988 = vmatpush1.bf16.msra.mxu0 %v920
  %989 = vmatprep.subr.bf16.mxu0 0
  %990 = vmatpush1.bf16.msra.mxu0 %v921
  %991 = vmatprep.subr.bf16.mxu0 0
  %992 = vmatpush1.bf16.msra.mxu0 %v922
  %993 = vmatprep.subr.bf16.mxu0 0
  %994 = vmatpush1.bf16.msra.mxu0 %v923
  %995 = vmatprep.subr.bf16.mxu0 0
  %996 = vmatpush1.bf16.msra.mxu0 %v924
  %997 = vmatprep.subr.bf16.mxu0 0
  %998 = vmatpush1.bf16.msra.mxu0 %v925
  %999 = vmatprep.subr.bf16.mxu0 0
  %1000 = vmatpush1.bf16.msra.mxu0 %v926
  %1001 = vmatprep.subr.bf16.mxu0 0
  %1002 = vmatpush1.bf16.msra.mxu0 %v927
  %1003 = vmatprep.subr.bf16.mxu0 0
  %1004 = vmatpush1.bf16.msra.mxu0 %v928
  %1005 = vmatprep.subr.bf16.mxu0 0
  %1006 = vmatpush1.bf16.msra.mxu0 %v929
  %1007 = vmatprep.subr.bf16.mxu0 0
  %1008 = vmatpush1.bf16.msra.mxu0 %v930
  %1009 = vmatprep.subr.bf16.mxu0 0
  %1010 = vmatpush1.bf16.msra.mxu0 %v931
  %1011 = vmatprep.subr.bf16.mxu0 0
  %1012 = vmatpush1.bf16.msra.mxu0 %v932
  %1013 = vmatprep.mubr.bf16.mxu0 %v717
  %1014 = vmatmul.mubr.bf16.gmra.mrb[0].mxu0 0
  %v1015 = vpop.f32.mrb[0].mxu0
  %v1016 = vadd.f32 0.0, %v1015
  %v1017 = vpop.f32.mrb[0].mxu0
  %v1018 = vpop.f32.mrb[0].mxu0
  %v1019 = vpop.f32.mrb[0].mxu0
  %1020 = vdwg.mxu0
  %1021 = vmatprep.subr.bf16.mxu0 0
  %1022 = vmatpush1.bf16.msra.mxu0 %v933
  %1023 = vmatprep.subr.bf16.mxu0 0
  %1024 = vmatpush1.bf16.msra.mxu0 %v934
  %1025 = vmatprep.subr.bf16.mxu0 0
  %1026 = vmatpush1.bf16.msra.mxu0 %v935
  %1027 = vmatprep.subr.bf16.mxu0 0
  %1028 = vmatpush1.bf16.msra.mxu0 %v936
  %1029 = vmatprep.subr.bf16.mxu0 0
  %1030 = vmatpush1.bf16.msra.mxu0 %v937
  %1031 = vmatprep.subr.bf16.mxu0 0
  %1032 = vmatpush1.bf16.msra.mxu0 %v938
  %1033 = vmatprep.subr.bf16.mxu0 0
  %1034 = vmatpush1.bf16.msra.mxu0 %v939
  %1035 = vmatprep.subr.bf16.mxu0 0
  %1036 = vmatpush1.bf16.msra.mxu0 %v940
  %1037 = vmatprep.subr.bf16.mxu0 0
  %1038 = vmatpush1.bf16.msra.mxu0 %v941
  %1039 = vmatprep.subr.bf16.mxu0 0
  %1040 = vmatpush1.bf16.msra.mxu0 %v942
  %1041 = vmatprep.subr.bf16.mxu0 0
  %1042 = vmatpush1.bf16.msra.mxu0 %v943
  %1043 = vmatprep.subr.bf16.mxu0 0
  %1044 = vmatpush1.bf16.msra.mxu0 %v944
  %1045 = vmatprep.subr.bf16.mxu0 0
  %1046 = vmatpush1.bf16.msra.mxu0 %v945
  %1047 = vmatprep.subr.bf16.mxu0 0
  %1048 = vmatpush1.bf16.msra.mxu0 %v946
  %1049 = vmatprep.subr.bf16.mxu0 0
  %1050 = vmatpush1.bf16.msra.mxu0 %v947
  %1051 = vmatprep.subr.bf16.mxu0 0
  %1052 = vmatpush1.bf16.msra.mxu0 %v948
  %1053 = vmatprep.mubr.bf16.mxu0 %v719
  %1054 = vmatmul.mubr.bf16.gmra.mrb[0].mxu0 %v718
  %v1055 = vpop.f32.mrb[0].mxu0
  %v1056 = vadd.f32 %v1016, %v1055
  %v1057 = vpop.f32.mrb[0].mxu0
  %v1058 = vpop.f32.mrb[0].mxu0
  %v1059 = vpop.f32.mrb[0].mxu0
  %1060 = vdwg.mxu0
  %1061 = vmatprep.subr.bf16.mxu0 0
  %1062 = vmatpush1.bf16.msra.mxu0 %v917
  %1063 = vmatprep.subr.bf16.mxu0 0
  %1064 = vmatpush1.bf16.msra.mxu0 %v918
  %1065 = vmatprep.subr.bf16.mxu0 0
  %1066 = vmatpush1.bf16.msra.mxu0 %v919
  %1067 = vmatprep.subr.bf16.mxu0 0
  %1068 = vmatpush1.bf16.msra.mxu0 %v920
  %1069 = vmatprep.subr.bf16.mxu0 0
  %1070 = vmatpush1.bf16.msra.mxu0 %v921
  %1071 = vmatprep.subr.bf16.mxu0 0
  %1072 = vmatpush1.bf16.msra.mxu0 %v922
  %1073 = vmatprep.subr.bf16.mxu0 0
  %1074 = vmatpush1.bf16.msra.mxu0 %v923
  %1075 = vmatprep.subr.bf16.mxu0 0
  %1076 = vmatpush1.bf16.msra.mxu0 %v924
  %1077 = vmatprep.subr.bf16.mxu0 0
  %1078 = vmatpush1.bf16.msra.mxu0 %v925
  %1079 = vmatprep.subr.bf16.mxu0 0
  %1080 = vmatpush1.bf16.msra.mxu0 %v926
  %1081 = vmatprep.subr.bf16.mxu0 0
  %1082 = vmatpush1.bf16.msra.mxu0 %v927
  %1083 = vmatprep.subr.bf16.mxu0 0
  %1084 = vmatpush1.bf16.msra.mxu0 %v928
  %1085 = vmatprep.subr.bf16.mxu0 0
  %1086 = vmatpush1.bf16.msra.mxu0 %v929
  %1087 = vmatprep.subr.bf16.mxu0 0
  %1088 = vmatpush1.bf16.msra.mxu0 %v930
  %1089 = vmatprep.subr.bf16.mxu0 0
  %1090 = vmatpush1.bf16.msra.mxu0 %v931
  %1091 = vmatprep.subr.bf16.mxu0 0
  %1092 = vmatpush1.bf16.msra.mxu0 %v932
  %1093 = vmatprep.mubr.bf16.mxu0 %v719
  %1094 = vmatmul.mubr.bf16.gmra.mrb[0].mxu0 %v718
  %v1095 = vpop.f32.mrb[0].mxu0
  %v1096 = vadd.f32 0.0, %v1095
  %v1097 = vpop.f32.mrb[0].mxu0
  %v1098 = vpop.f32.mrb[0].mxu0
  %v1099 = vpop.f32.mrb[0].mxu0
  %1100 = vdwg.mxu0
  %1101 = vmatprep.subr.bf16.mxu0 0
  %1102 = vmatpush1.bf16.msra.mxu0 %v933
  %1103 = vmatprep.subr.bf16.mxu0 0
  %1104 = vmatpush1.bf16.msra.mxu0 %v934
  %1105 = vmatprep.subr.bf16.mxu0 0
  %1106 = vmatpush1.bf16.msra.mxu0 %v935
  %1107 = vmatprep.subr.bf16.mxu0 0
  %1108 = vmatpush1.bf16.msra.mxu0 %v936
  %1109 = vmatprep.subr.bf16.mxu0 0
  %1110 = vmatpush1.bf16.msra.mxu0 %v937
  %1111 = vmatprep.subr.bf16.mxu0 0
  %1112 = vmatpush1.bf16.msra.mxu0 %v938
  %1113 = vmatprep.subr.bf16.mxu0 0
  %1114 = vmatpush1.bf16.msra.mxu0 %v939
  %1115 = vmatprep.subr.bf16.mxu0 0
  %1116 = vmatpush1.bf16.msra.mxu0 %v940
  %1117 = vmatprep.subr.bf16.mxu0 0
  %1118 = vmatpush1.bf16.msra.mxu0 %v941
  %1119 = vmatprep.subr.bf16.mxu0 0
  %1120 = vmatpush1.bf16.msra.mxu0 %v942
  %1121 = vmatprep.subr.bf16.mxu0 0
  %1122 = vmatpush1.bf16.msra.mxu0 %v943
  %1123 = vmatprep.subr.bf16.mxu0 0
  %1124 = vmatpush1.bf16.msra.mxu0 %v944
  %1125 = vmatprep.subr.bf16.mxu0 0
  %1126 = vmatpush1.bf16.msra.mxu0 %v945
  %1127 = vmatprep.subr.bf16.mxu0 0
  %1128 = vmatpush1.bf16.msra.mxu0 %v946
  %1129 = vmatprep.subr.bf16.mxu0 0
  %1130 = vmatpush1.bf16.msra.mxu0 %v947
  %1131 = vmatprep.subr.bf16.mxu0 0
  %1132 = vmatpush1.bf16.msra.mxu0 %v948
  %1133 = vmatprep.mubr.bf16.mxu0 %v721
  %1134 = vmatmul.mubr.bf16.gmra.mrb[0].mxu0 %v720
  %v1135 = vpop.f32.mrb[0].mxu0
  %v1136 = vadd.f32 %v1096, %v1135
  %v1137 = vpop.f32.mrb[0].mxu0
  %v1138 = vpop.f32.mrb[0].mxu0
  %v1139 = vpop.f32.mrb[0].mxu0
  %1140 = vdwg.mxu0
  %1141 = vmatprep.subr.bf16.mxu0 0
  %1142 = vmatpush1.bf16.msra.mxu0 %v917
  %1143 = vmatprep.subr.bf16.mxu0 0
  %1144 = vmatpush1.bf16.msra.mxu0 %v918
  %1145 = vmatprep.subr.bf16.mxu0 0
  %1146 = vmatpush1.bf16.msra.mxu0 %v919
  %1147 = vmatprep.subr.bf16.mxu0 0
  %1148 = vmatpush1.bf16.msra.mxu0 %v920
  %1149 = vmatprep.subr.bf16.mxu0 0
  %1150 = vmatpush1.bf16.msra.mxu0 %v921
  %1151 = vmatprep.subr.bf16.mxu0 0
  %1152 = vmatpush1.bf16.msra.mxu0 %v922
  %1153 = vmatprep.subr.bf16.mxu0 0
  %1154 = vmatpush1.bf16.msra.mxu0 %v923
  %1155 = vmatprep.subr.bf16.mxu0 0
  %1156 = vmatpush1.bf16.msra.mxu0 %v924
  %1157 = vmatprep.subr.bf16.mxu0 0
  %1158 = vmatpush1.bf16.msra.mxu0 %v925
  %1159 = vmatprep.subr.bf16.mxu0 0
  %1160 = vmatpush1.bf16.msra.mxu0 %v926
  %1161 = vmatprep.subr.bf16.mxu0 0
  %1162 = vmatpush1.bf16.msra.mxu0 %v927
  %1163 = vmatprep.subr.bf16.mxu0 0
  %1164 = vmatpush1.bf16.msra.mxu0 %v928
  %1165 = vmatprep.subr.bf16.mxu0 0
  %1166 = vmatpush1.bf16.msra.mxu0 %v929
  %1167 = vmatprep.subr.bf16.mxu0 0
  %1168 = vmatpush1.bf16.msra.mxu0 %v930
  %1169 = vmatprep.subr.bf16.mxu0 0
  %1170 = vmatpush1.bf16.msra.mxu0 %v931
  %1171 = vmatprep.subr.bf16.mxu0 0
  %1172 = vmatpush1.bf16.msra.mxu0 %v932
  %1173 = vmatprep.mubr.bf16.mxu0 %v721
  %1174 = vmatmul.mubr.bf16.gmra.mrb[0].mxu0 %v720
  %v1175 = vpop.f32.mrb[0].mxu0
  %v1176 = vadd.f32 0.0, %v1175
  %v1177 = vpop.f32.mrb[0].mxu0
  %v1178 = vpop.f32.mrb[0].mxu0
  %v1179 = vpop.f32.mrb[0].mxu0
  %1180 = vdwg.mxu0
  %1181 = vmatprep.subr.bf16.mxu0 0
  %1182 = vmatpush1.bf16.msra.mxu0 %v933
  %1183 = vmatprep.subr.bf16.mxu0 0
  %1184 = vmatpush1.bf16.msra.mxu0 %v934
  %1185 = vmatprep.subr.bf16.mxu0 0
  %1186 = vmatpush1.bf16.msra.mxu0 %v935
  %1187 = vmatprep.subr.bf16.mxu0 0
  %1188 = vmatpush1.bf16.msra.mxu0 %v936
  %1189 = vmatprep.subr.bf16.mxu0 0
  %1190 = vmatpush1.bf16.msra.mxu0 %v937
  %1191 = vmatprep.subr.bf16.mxu0 0
  %1192 = vmatpush1.bf16.msra.mxu0 %v938
  %1193 = vmatprep.subr.bf16.mxu0 0
  %1194 = vmatpush1.bf16.msra.mxu0 %v939
  %1195 = vmatprep.subr.bf16.mxu0 0
  %1196 = vmatpush1.bf16.msra.mxu0 %v940
  %1197 = vmatprep.subr.bf16.mxu0 0
  %1198 = vmatpush1.bf16.msra.mxu0 %v941
  %1199 = vmatprep.subr.bf16.mxu0 0
  %1200 = vmatpush1.bf16.msra.mxu0 %v942
  %1201 = vmatprep.subr.bf16.mxu0 0
  %1202 = vmatpush1.bf16.msra.mxu0 %v943
  %1203 = vmatprep.subr.bf16.mxu0 0
  %1204 = vmatpush1.bf16.msra.mxu0 %v944
  %1205 = vmatprep.subr.bf16.mxu0 0
  %1206 = vmatpush1.bf16.msra.mxu0 %v945
  %1207 = vmatprep.subr.bf16.mxu0 0
  %1208 = vmatpush1.bf16.msra.mxu0 %v946
  %1209 = vmatprep.subr.bf16.mxu0 0
  %1210 = vmatpush1.bf16.msra.mxu0 %v947
  %1211 = vmatprep.subr.bf16.mxu0 0
  %1212 = vmatpush1.bf16.msra.mxu0 %v948
  %1213 = vmatprep.mubr.bf16.mxu0 %v723
  %1214 = vmatmul.mubr.bf16.gmra.mrb[0].mxu0 %v722
  %v1215 = vpop.f32.mrb[0].mxu0
  %v1216 = vadd.f32 %v1176, %v1215
  %v1217 = vpop.f32.mrb[0].mxu0
  %v1218 = vpop.f32.mrb[0].mxu0
  %v1219 = vpop.f32.mrb[0].mxu0
  %1220 = vdwg.mxu0
  %1221 = vmatprep.subr.bf16.mxu0 0
  %1222 = vmatpush1.bf16.msra.mxu0 %v917
  %1223 = vmatprep.subr.bf16.mxu0 0
  %1224 = vmatpush1.bf16.msra.mxu0 %v918
  %1225 = vmatprep.subr.bf16.mxu0 0
  %1226 = vmatpush1.bf16.msra.mxu0 %v919
  %1227 = vmatprep.subr.bf16.mxu0 0
  %1228 = vmatpush1.bf16.msra.mxu0 %v920
  %1229 = vmatprep.subr.bf16.mxu0 0
  %1230 = vmatpush1.bf16.msra.mxu0 %v921
  %1231 = vmatprep.subr.bf16.mxu0 0
  %1232 = vmatpush1.bf16.msra.mxu0 %v922
  %1233 = vmatprep.subr.bf16.mxu0 0
  %1234 = vmatpush1.bf16.msra.mxu0 %v923
  %1235 = vmatprep.subr.bf16.mxu0 0
  %1236 = vmatpush1.bf16.msra.mxu0 %v924
  %1237 = vmatprep.subr.bf16.mxu0 0
  %1238 = vmatpush1.bf16.msra.mxu0 %v925
  %1239 = vmatprep.subr.bf16.mxu0 0
  %1240 = vmatpush1.bf16.msra.mxu0 %v926
  %1241 = vmatprep.subr.bf16.mxu0 0
  %1242 = vmatpush1.bf16.msra.mxu0 %v927
  %1243 = vmatprep.subr.bf16.mxu0 0
  %1244 = vmatpush1.bf16.msra.mxu0 %v928
  %1245 = vmatprep.subr.bf16.mxu0 0
  %1246 = vmatpush1.bf16.msra.mxu0 %v929
  %1247 = vmatprep.subr.bf16.mxu0 0
  %1248 = vmatpush1.bf16.msra.mxu0 %v930
  %1249 = vmatprep.subr.bf16.mxu0 0
  %1250 = vmatpush1.bf16.msra.mxu0 %v931
  %1251 = vmatprep.subr.bf16.mxu0 0
  %1252 = vmatpush1.bf16.msra.mxu0 %v932
  %1253 = vmatprep.mubr.bf16.mxu0 %v723
  %1254 = vmatmul.mubr.bf16.gmra.mrb[0].mxu0 %v722
  %v1255 = vpop.f32.mrb[0].mxu0
  %v1256 = vadd.f32 0.0, %v1255
  %v1257 = vpop.f32.mrb[0].mxu0
  %v1258 = vpop.f32.mrb[0].mxu0
  %v1259 = vpop.f32.mrb[0].mxu0
  %1260 = vdwg.mxu0
  %1261 = vmatprep.subr.bf16.mxu0 0
  %1262 = vmatpush1.bf16.msra.mxu0 %v933
  %1263 = vmatprep.subr.bf16.mxu0 0
  %1264 = vmatpush1.bf16.msra.mxu0 %v934
  %1265 = vmatprep.subr.bf16.mxu0 0
  %1266 = vmatpush1.bf16.msra.mxu0 %v935
  %1267 = vmatprep.subr.bf16.mxu0 0
  %1268 = vmatpush1.bf16.msra.mxu0 %v936
  %1269 = vmatprep.subr.bf16.mxu0 0
  %1270 = vmatpush1.bf16.msra.mxu0 %v937
  %1271 = vmatprep.subr.bf16.mxu0 0
  %1272 = vmatpush1.bf16.msra.mxu0 %v938
  %1273 = vmatprep.subr.bf16.mxu0 0
  %1274 = vmatpush1.bf16.msra.mxu0 %v939
  %1275 = vmatprep.subr.bf16.mxu0 0
  %1276 = vmatpush1.bf16.msra.mxu0 %v940
  %1277 = vmatprep.subr.bf16.mxu0 0
  %1278 = vmatpush1.bf16.msra.mxu0 %v941
  %1279 = vmatprep.subr.bf16.mxu0 0
  %1280 = vmatpush1.bf16.msra.mxu0 %v942
  %1281 = vmatprep.subr.bf16.mxu0 0
  %1282 = vmatpush1.bf16.msra.mxu0 %v943
  %1283 = vmatprep.subr.bf16.mxu0 0
  %1284 = vmatpush1.bf16.msra.mxu0 %v944
  %1285 = vmatprep.subr.bf16.mxu0 0
  %1286 = vmatpush1.bf16.msra.mxu0 %v945
  %1287 = vmatprep.subr.bf16.mxu0 0
  %1288 = vmatpush1.bf16.msra.mxu0 %v946
  %1289 = vmatprep.subr.bf16.mxu0 0
  %1290 = vmatpush1.bf16.msra.mxu0 %v947
  %1291 = vmatprep.subr.bf16.mxu0 0
  %1292 = vmatpush1.bf16.msra.mxu0 %v948
  %1293 = vmatprep.mubr.bf16.mxu0 0
  %1294 = vmatmul.mubr.bf16.gmra.mrb[0].mxu0 %v724
  %v1295 = vpop.f32.mrb[0].mxu0
  %v1296 = vadd.f32 %v1256, %v1295
  %v1297 = vpop.f32.mrb[0].mxu0
  %v1298 = vpop.f32.mrb[0].mxu0
  %v1299 = vpop.f32.mrb[0].mxu0
  %1300 = vdwg.mxu0
  %vm1301 = vcmask 1041408
  %v1302 = vsel %vm1301, %v1056, 0.0
  %v1303 = vrot.slane %v1302, 4
  %v1304 = vadd.f32 %v1302, %v1303
  %v1305 = vrot.slane %v1304, 2
  %v1306 = vadd.f32 %v1304, %v1305
  %v1307 = vrot.slane %v1306, 1
  %v1308 = vadd.f32 %v1306, %v1307
  %v1309 = vadd.f32 %v1308, 0.0
  %v1310 = vmul.f32 %v1056, %v1056
  %v1311 = vsel %vm1301, %v1310, 0.0
  %v1312 = vrot.slane %v1311, 4
  %v1313 = vadd.f32 %v1311, %v1312
  %v1314 = vrot.slane %v1313, 2
  %v1315 = vadd.f32 %v1313, %v1314
  %v1316 = vrot.slane %v1315, 1
  %v1317 = vadd.f32 %v1315, %v1316
  %v1318 = vadd.f32 %v1317, 0.0
  %v1319 = vsel %vm1301, %v1136, 0.0
  %v1320 = vrot.slane %v1319, 4
  %v1321 = vadd.f32 %v1319, %v1320
  %v1322 = vrot.slane %v1321, 2
  %v1323 = vadd.f32 %v1321, %v1322
  %v1324 = vrot.slane %v1323, 1
  %v1325 = vadd.f32 %v1323, %v1324
  %v1326 = vadd.f32 %v1309, %v1325
  %v1327 = vmul.f32 %v1136, %v1136
  %v1328 = vsel %vm1301, %v1327, 0.0
  %v1329 = vrot.slane %v1328, 4
  %v1330 = vadd.f32 %v1328, %v1329
  %v1331 = vrot.slane %v1330, 2
  %v1332 = vadd.f32 %v1330, %v1331
  %v1333 = vrot.slane %v1332, 1
  %v1334 = vadd.f32 %v1332, %v1333
  %v1335 = vadd.f32 %v1318, %v1334
  %v1336 = vsel %vm1301, %v1216, 0.0
  %v1337 = vrot.slane %v1336, 4
  %v1338 = vadd.f32 %v1336, %v1337
  %v1339 = vrot.slane %v1338, 2
  %v1340 = vadd.f32 %v1338, %v1339
  %v1341 = vrot.slane %v1340, 1
  %v1342 = vadd.f32 %v1340, %v1341
  %v1343 = vadd.f32 %v1326, %v1342
  %v1344 = vmul.f32 %v1216, %v1216
  %v1345 = vsel %vm1301, %v1344, 0.0
  %v1346 = vrot.slane %v1345, 4
  %v1347 = vadd.f32 %v1345, %v1346
  %v1348 = vrot.slane %v1347, 2
  %v1349 = vadd.f32 %v1347, %v1348
  %v1350 = vrot.slane %v1349, 1
  %v1351 = vadd.f32 %v1349, %v1350
  %v1352 = vadd.f32 %v1335, %v1351
  %v1353 = vsel %vm1301, %v1296, 0.0
  %v1354 = vrot.slane %v1353, 4
  %v1355 = vadd.f32 %v1353, %v1354
  %v1356 = vrot.slane %v1355, 2
  %v1357 = vadd.f32 %v1355, %v1356
  %v1358 = vrot.slane %v1357, 1
  %v1359 = vadd.f32 %v1357, %v1358
  %v1360 = vadd.f32 %v1343, %v1359
  %v1361 = vmul.f32 %v1296, %v1296
  %v1362 = vsel %vm1301, %v1361, 0.0
  %v1363 = vrot.slane %v1362, 4
  %v1364 = vadd.f32 %v1362, %v1363
  %v1365 = vrot.slane %v1364, 2
  %v1366 = vadd.f32 %v1364, %v1365
  %v1367 = vrot.slane %v1366, 1
  %v1368 = vadd.f32 %v1366, %v1367
  %v1369 = vadd.f32 %v1352, %v1368
  %1370 = vrot.lane.b32.xlu0 %v1360, 32
  %v1371 = vpop.permute.xlu0 %1370
  %v1372 = vadd.f32 %v1360, %v1371
  %1373 = vrot.lane.b32.xlu0 %v1369, 32
  %v1374 = vpop.permute.xlu0 %1373
  %v1375 = vadd.f32 %v1369, %v1374
  %1376 = vrot.lane.b32.xlu0 %v1372, 64
  %v1377 = vpop.permute.xlu0 %1376
  %v1378 = vadd.f32 %v1372, %v1377
  %1379 = vrot.lane.b32.xlu0 %v1375, 64
  %v1380 = vpop.permute.xlu0 %1379
  %v1381 = vadd.f32 %v1375, %v1380
  %v1382 = vrcp.pop 32.0
  %v1383 = vmul.f32 %v1378, %v1382
  %v1384 = vmul.f32 %v1381, %v1382
  %v1385 = vmul.f32 %v1383, %v1383
  %v1386 = vsub.f32 %v1384, %v1385
  %v1387 = vld [vmem:[%s5] sm:$0x1]
  %v1388 = vadd.f32 %v1386, 1e-05
  %v1389 = vrsqrt.pop %v1388
  %v1390 = vmul.f32 %v1387, %v1389
  %v1391 = vld [vmem:[%s6] sm:$0x1]
  %v1392 = vmul.f32 %v1383, %v1390
  %v1393 = vsub.f32 %v1391, %v1392
  %v1395 = vlaneseq
  %v1396 = vshrl.u32 %v1395, 7
  %v1397 = vsub.s32 0, %v1396
  %v1398 = vrot.slane %v1390, %v1397
  %v1400 = vmul.f32 %v1056, %v1398
  %v1402 = vlaneseq
  %v1403 = vshrl.u32 %v1402, 7
  %v1404 = vsub.s32 0, %v1403
  %v1405 = vrot.slane %v1393, %v1404
  %v1407 = vadd.f32 %v1400, %v1405
  %v1408 = vmul.f32 %v1136, %v1398
  %v1409 = vadd.f32 %v1408, %v1405
  %v1410 = vmul.f32 %v1216, %v1398
  %v1411 = vadd.f32 %v1410, %v1405
  %v1412 = vmul.f32 %v1296, %v1398
  %v1413 = vadd.f32 %v1412, %v1405
  %vm1414 = vcmp.ge.f32.partialorder %v1407, 0.0
  %v1415 = vmul.f32 %v1407, 0.2
  %v1416 = vsel %vm1414, %v1407, %v1415
  %vm1417 = vcmp.ge.f32.partialorder %v1409, 0.0
  %v1418 = vmul.f32 %v1409, 0.2
  %v1419 = vsel %vm1417, %v1409, %v1418
  %vm1420 = vcmp.ge.f32.partialorder %v1411, 0.0
  %v1421 = vmul.f32 %v1411, 0.2
  %v1422 = vsel %vm1420, %v1411, %v1421
  %vm1423 = vcmp.ge.f32.partialorder %v1413, 0.0
  %v1424 = vmul.f32 %v1413, 0.2
  %v1425 = vsel %vm1423, %v1413, %v1424
  %v1426 = vpack.c.bf16 %v1416, %v1416
  %v1427 = vpack.c.bf16 %v1419, %v1419
  %v1428 = vpack.c.bf16 %v1422, %v1422
  %v1429 = vpack.c.bf16 %v1425, %v1425
  %v1430 = vld [vmem:[%s3] sm:$0xf]
  %v1431 = vld [vmem:[%s3 + $0x4] sm:$0xf]
  %v1432 = vld [vmem:[%s3 + $0x8] sm:$0xf]
  %v1433 = vld [vmem:[%s3 + $0xc] sm:$0xf]
  %v1434 = vld [vmem:[%s3 + $0x10] sm:$0xf]
  %v1435 = vld [vmem:[%s3 + $0x14] sm:$0xf]
  %v1436 = vld [vmem:[%s3 + $0x18] sm:$0xf]
  %v1437 = vld [vmem:[%s3 + $0x1c] sm:$0xf]
  %v1438 = vld [vmem:[%s3 + $0x20] sm:$0xf]
  %v1439 = vld [vmem:[%s3 + $0x24] sm:$0xf]
  %v1440 = vld [vmem:[%s3 + $0x28] sm:$0xf]
  %v1441 = vld [vmem:[%s3 + $0x2c] sm:$0xf]
  %v1442 = vld [vmem:[%s3 + $0x30] sm:$0xf]
  %v1443 = vld [vmem:[%s3 + $0x34] sm:$0xf]
  %v1444 = vld [vmem:[%s3 + $0x38] sm:$0xf]
  %v1445 = vld [vmem:[%s3 + $0x3c] sm:$0xf]
  %v1446 = vld [vmem:[%s3 + $0x40] sm:$0xf]
  %v1447 = vld [vmem:[%s3 + $0x44] sm:$0xf]
  %v1448 = vld [vmem:[%s3 + $0x48] sm:$0xf]
  %v1449 = vld [vmem:[%s3 + $0x4c] sm:$0xf]
  %v1450 = vld [vmem:[%s3 + $0x50] sm:$0xf]
  %v1451 = vld [vmem:[%s3 + $0x54] sm:$0xf]
  %v1452 = vld [vmem:[%s3 + $0x58] sm:$0xf]
  %v1453 = vld [vmem:[%s3 + $0x5c] sm:$0xf]
  %v1454 = vld [vmem:[%s3 + $0x60] sm:$0xf]
  %v1455 = vld [vmem:[%s3 + $0x64] sm:$0xf]
  %v1456 = vld [vmem:[%s3 + $0x68] sm:$0xf]
  %v1457 = vld [vmem:[%s3 + $0x6c] sm:$0xf]
  %v1458 = vld [vmem:[%s3 + $0x70] sm:$0xf]
  %v1459 = vld [vmem:[%s3 + $0x74] sm:$0xf]
  %v1460 = vld [vmem:[%s3 + $0x78] sm:$0xf]
  %v1461 = vld [vmem:[%s3 + $0x7c] sm:$0xf]
  %v1462 = vld [vmem:[%s3 + $0x80] sm:$0xf]
  %v1463 = vld [vmem:[%s3 + $0x84] sm:$0xf]
  %v1464 = vld [vmem:[%s3 + $0x88] sm:$0xf]
  %v1465 = vld [vmem:[%s3 + $0x8c] sm:$0xf]
  %v1466 = vld [vmem:[%s3 + $0x90] sm:$0xf]
  %v1467 = vld [vmem:[%s3 + $0x94] sm:$0xf]
  %v1468 = vld [vmem:[%s3 + $0x98] sm:$0xf]
  %v1469 = vld [vmem:[%s3 + $0x9c] sm:$0xf]
  %v1470 = vld [vmem:[%s3 + $0xa0] sm:$0xf]
  %v1471 = vld [vmem:[%s3 + $0xa4] sm:$0xf]
  %v1472 = vld [vmem:[%s3 + $0xa8] sm:$0xf]
  %v1473 = vld [vmem:[%s3 + $0xac] sm:$0xf]
  %v1474 = vld [vmem:[%s3 + $0xb0] sm:$0xf]
  %v1475 = vld [vmem:[%s3 + $0xb4] sm:$0xf]
  %v1476 = vld [vmem:[%s3 + $0xb8] sm:$0xf]
  %v1477 = vld [vmem:[%s3 + $0xbc] sm:$0xf]
  %v1478 = vld [vmem:[%s3 + $0xc0] sm:$0xf]
  %v1479 = vld [vmem:[%s3 + $0xc4] sm:$0xf]
  %v1480 = vld [vmem:[%s3 + $0xc8] sm:$0xf]
  %v1481 = vld [vmem:[%s3 + $0xcc] sm:$0xf]
  %v1482 = vld [vmem:[%s3 + $0xd0] sm:$0xf]
  %v1483 = vld [vmem:[%s3 + $0xd4] sm:$0xf]
  %v1484 = vld [vmem:[%s3 + $0xd8] sm:$0xf]
  %v1485 = vld [vmem:[%s3 + $0xdc] sm:$0xf]
  %v1486 = vld [vmem:[%s3 + $0xe0] sm:$0xf]
  %v1487 = vld [vmem:[%s3 + $0xe4] sm:$0xf]
  %v1488 = vld [vmem:[%s3 + $0xe8] sm:$0xf]
  %v1489 = vld [vmem:[%s3 + $0xec] sm:$0xf]
  %v1490 = vld [vmem:[%s3 + $0xf0] sm:$0xf]
  %v1491 = vld [vmem:[%s3 + $0xf4] sm:$0xf]
  %v1492 = vld [vmem:[%s3 + $0xf8] sm:$0xf]
  %v1493 = vld [vmem:[%s3 + $0xfc] sm:$0xf]
  %v1558 = vunpack.c.l.b16 %v1430
  %v1559 = vunpack.c.l.b16 %v1431
  %v1560 = vunpack.c.l.b16 %v1432
  %v1561 = vunpack.c.l.b16 %v1433
  %v1562 = vunpack.c.l.b16 %v1434
  %v1563 = vunpack.c.l.b16 %v1435
  %v1564 = vunpack.c.l.b16 %v1436
  %v1565 = vunpack.c.l.b16 %v1437
  %v1566 = vunpack.c.l.b16 %v1438
  %v1567 = vunpack.c.l.b16 %v1439
  %v1568 = vunpack.c.l.b16 %v1440
  %v1569 = vunpack.c.l.b16 %v1441
  %v1570 = vunpack.c.l.b16 %v1442
  %v1571 = vunpack.c.l.b16 %v1443
  %v1572 = vunpack.c.l.b16 %v1444
  %v1573 = vunpack.c.l.b16 %v1445
  %v1574 = vunpack.c.l.b16 %v1446
  %v1575 = vunpack.c.l.b16 %v1447
  %v1576 = vunpack.c.l.b16 %v1448
  %v1577 = vunpack.c.l.b16 %v1449
  %v1578 = vunpack.c.l.b16 %v1450
  %v1579 = vunpack.c.l.b16 %v1451
  %v1580 = vunpack.c.l.b16 %v1452
  %v1581 = vunpack.c.l.b16 %v1453
  %v1582 = vunpack.c.l.b16 %v1454
  %v1583 = vunpack.c.l.b16 %v1455
  %v1584 = vunpack.c.l.b16 %v1456
  %v1585 = vunpack.c.l.b16 %v1457
  %v1586 = vunpack.c.l.b16 %v1458
  %v1587 = vunpack.c.l.b16 %v1459
  %v1588 = vunpack.c.l.b16 %v1460
  %v1589 = vunpack.c.l.b16 %v1461
  %v1590 = vunpack.c.l.b16 %v1462
  %v1591 = vunpack.c.l.b16 %v1463
  %v1592 = vunpack.c.l.b16 %v1464
  %v1593 = vunpack.c.l.b16 %v1465
  %v1594 = vunpack.c.l.b16 %v1466
  %v1595 = vunpack.c.l.b16 %v1467
  %v1596 = vunpack.c.l.b16 %v1468
  %v1597 = vunpack.c.l.b16 %v1469
  %v1598 = vunpack.c.l.b16 %v1470
  %v1599 = vunpack.c.l.b16 %v1471
  %v1600 = vunpack.c.l.b16 %v1472
  %v1601 = vunpack.c.l.b16 %v1473
  %v1602 = vunpack.c.l.b16 %v1474
  %v1603 = vunpack.c.l.b16 %v1475
  %v1604 = vunpack.c.l.b16 %v1476
  %v1605 = vunpack.c.l.b16 %v1477
  %v1606 = vunpack.c.l.b16 %v1478
  %v1607 = vunpack.c.l.b16 %v1479
  %v1608 = vunpack.c.l.b16 %v1480
  %v1609 = vunpack.c.l.b16 %v1481
  %v1610 = vunpack.c.l.b16 %v1482
  %v1611 = vunpack.c.l.b16 %v1483
  %v1612 = vunpack.c.l.b16 %v1484
  %v1613 = vunpack.c.l.b16 %v1485
  %v1614 = vunpack.c.l.b16 %v1486
  %v1615 = vunpack.c.l.b16 %v1487
  %v1616 = vunpack.c.l.b16 %v1488
  %v1617 = vunpack.c.l.b16 %v1489
  %v1618 = vunpack.c.l.b16 %v1490
  %v1619 = vunpack.c.l.b16 %v1491
  %v1620 = vunpack.c.l.b16 %v1492
  %v1621 = vunpack.c.l.b16 %v1493
  %v1622 = vpack.c.b16 %v1559, %v1558
  %v1623 = vpack.c.b16 %v1561, %v1560
  %v1624 = vpack.c.b16 %v1563, %v1562
  %v1625 = vpack.c.b16 %v1565, %v1564
  %v1626 = vpack.c.b16 %v1567, %v1566
  %v1627 = vpack.c.b16 %v1569, %v1568
  %v1628 = vpack.c.b16 %v1571, %v1570
  %v1629 = vpack.c.b16 %v1573, %v1572
  %v1630 = vpack.c.b16 %v1575, %v1574
  %v1631 = vpack.c.b16 %v1577, %v1576
  %v1632 = vpack.c.b16 %v1579, %v1578
  %v1633 = vpack.c.b16 %v1581, %v1580
  %v1634 = vpack.c.b16 %v1583, %v1582
  %v1635 = vpack.c.b16 %v1585, %v1584
  %v1636 = vpack.c.b16 %v1587, %v1586
  %v1637 = vpack.c.b16 %v1589, %v1588
  %v1638 = vpack.c.b16 %v1591, %v1590
  %v1639 = vpack.c.b16 %v1593, %v1592
  %v1640 = vpack.c.b16 %v1595, %v1594
  %v1641 = vpack.c.b16 %v1597, %v1596
  %v1642 = vpack.c.b16 %v1599, %v1598
  %v1643 = vpack.c.b16 %v1601, %v1600
  %v1644 = vpack.c.b16 %v1603, %v1602
  %v1645 = vpack.c.b16 %v1605, %v1604
  %v1646 = vpack.c.b16 %v1607, %v1606
  %v1647 = vpack.c.b16 %v1609, %v1608
  %v1648 = vpack.c.b16 %v1611, %v1610
  %v1649 = vpack.c.b16 %v1613, %v1612
  %v1650 = vpack.c.b16 %v1615, %v1614
  %v1651 = vpack.c.b16 %v1617, %v1616
  %v1652 = vpack.c.b16 %v1619, %v1618
  %v1653 = vpack.c.b16 %v1621, %v1620
  %1686 = vmatprep.subr.bf16.mxu0 0
  %1687 = vmatpush1.bf16.msra.mxu0 %v1622
  %1688 = vmatprep.subr.bf16.mxu0 0
  %1689 = vmatpush1.bf16.msra.mxu0 %v1623
  %1690 = vmatprep.subr.bf16.mxu0 0
  %1691 = vmatpush1.bf16.msra.mxu0 %v1624
  %1692 = vmatprep.subr.bf16.mxu0 0
  %1693 = vmatpush1.bf16.msra.mxu0 %v1625
  %1694 = vmatprep.subr.bf16.mxu0 0
  %1695 = vmatpush1.bf16.msra.mxu0 %v1626
  %1696 = vmatprep.subr.bf16.mxu0 0
  %1697 = vmatpush1.bf16.msra.mxu0 %v1627
  %1698 = vmatprep.subr.bf16.mxu0 0
  %1699 = vmatpush1.bf16.msra.mxu0 %v1628
  %1700 = vmatprep.subr.bf16.mxu0 0
  %1701 = vmatpush1.bf16.msra.mxu0 %v1629
  %1702 = vmatprep.subr.bf16.mxu0 0
  %1703 = vmatpush1.bf16.msra.mxu0 %v1630
  %1704 = vmatprep.subr.bf16.mxu0 0
  %1705 = vmatpush1.bf16.msra.mxu0 %v1631
  %1706 = vmatprep.subr.bf16.mxu0 0
  %1707 = vmatpush1.bf16.msra.mxu0 %v1632
  %1708 = vmatprep.subr.bf16.mxu0 0
  %1709 = vmatpush1.bf16.msra.mxu0 %v1633
  %1710 = vmatprep.subr.bf16.mxu0 0
  %1711 = vmatpush1.bf16.msra.mxu0 %v1634
  %1712 = vmatprep.subr.bf16.mxu0 0
  %1713 = vmatpush1.bf16.msra.mxu0 %v1635
  %1714 = vmatprep.subr.bf16.mxu0 0
  %1715 = vmatpush1.bf16.msra.mxu0 %v1636
  %1716 = vmatprep.subr.bf16.mxu0 0
  %1717 = vmatpush1.bf16.msra.mxu0 %v1637
  %1718 = vmatprep.mubr.bf16.mxu0 %v1426
  %1719 = vmatmul.mubr.bf16.gmra.mrb[0].mxu0 0
  %v1720 = vpop.f32.mrb[0].mxu0
  %v1721 = vadd.f32 0.0, %v1720
  %v1722 = vpop.f32.mrb[0].mxu0
  %v1723 = vpop.f32.mrb[0].mxu0
  %v1724 = vpop.f32.mrb[0].mxu0
  %1725 = vdwg.mxu0
  %1726 = vmatprep.subr.bf16.mxu0 0
  %1727 = vmatpush1.bf16.msra.mxu0 %v1638
  %1728 = vmatprep.subr.bf16.mxu0 0
  %1729 = vmatpush1.bf16.msra.mxu0 %v1639
  %1730 = vmatprep.subr.bf16.mxu0 0
  %1731 = vmatpush1.bf16.msra.mxu0 %v1640
  %1732 = vmatprep.subr.bf16.mxu0 0
  %1733 = vmatpush1.bf16.msra.mxu0 %v1641
  %1734 = vmatprep.subr.bf16.mxu0 0
  %1735 = vmatpush1.bf16.msra.mxu0 %v1642
  %1736 = vmatprep.subr.bf16.mxu0 0
  %1737 = vmatpush1.bf16.msra.mxu0 %v1643
  %1738 = vmatprep.subr.bf16.mxu0 0
  %1739 = vmatpush1.bf16.msra.mxu0 %v1644
  %1740 = vmatprep.subr.bf16.mxu0 0
  %1741 = vmatpush1.bf16.msra.mxu0 %v1645
  %1742 = vmatprep.subr.bf16.mxu0 0
  %1743 = vmatpush1.bf16.msra.mxu0 %v1646
  %1744 = vmatprep.subr.bf16.mxu0 0
  %1745 = vmatpush1.bf16.msra.mxu0 %v1647
  %1746 = vmatprep.subr.bf16.mxu0 0
  %1747 = vmatpush1.bf16.msra.mxu0 %v1648
  %1748 = vmatprep.subr.bf16.mxu0 0
  %1749 = vmatpush1.bf16.msra.mxu0 %v1649
  %1750 = vmatprep.subr.bf16.mxu0 0
  %1751 = vmatpush1.bf16.msra.mxu0 %v1650
  %1752 = vmatprep.subr.bf16.mxu0 0
  %1753 = vmatpush1.bf16.msra.mxu0 %v1651
  %1754 = vmatprep.subr.bf16.mxu0 0
  %1755 = vmatpush1.bf16.msra.mxu0 %v1652
  %1756 = vmatprep.subr.bf16.mxu0 0
  %1757 = vmatpush1.bf16.msra.mxu0 %v1653
  %1758 = vmatprep.mubr.bf16.mxu0 %v1428
  %1759 = vmatmul.mubr.bf16.gmra.mrb[0].mxu0 %v1427
  %v1760 = vpop.f32.mrb[0].mxu0
  %v1761 = vadd.f32 %v1721, %v1760
  %v1762 = vpop.f32.mrb[0].mxu0
  %v1763 = vpop.f32.mrb[0].mxu0
  %v1764 = vpop.f32.mrb[0].mxu0
  %1765 = vdwg.mxu0
  %1766 = vmatprep.subr.bf16.mxu0 0
  %1767 = vmatpush1.bf16.msra.mxu0 %v1622
  %1768 = vmatprep.subr.bf16.mxu0 0
  %1769 = vmatpush1.bf16.msra.mxu0 %v1623
  %1770 = vmatprep.subr.bf16.mxu0 0
  %1771 = vmatpush1.bf16.msra.mxu0 %v1624
  %1772 = vmatprep.subr.bf16.mxu0 0
  %1773 = vmatpush1.bf16.msra.mxu0 %v1625
  %1774 = vmatprep.subr.bf16.mxu0 0
  %1775 = vmatpush1.bf16.msra.mxu0 %v1626
  %1776 = vmatprep.subr.bf16.mxu0 0
  %1777 = vmatpush1.bf16.msra.mxu0 %v1627
  %1778 = vmatprep.subr.bf16.mxu0 0
  %1779 = vmatpush1.bf16.msra.mxu0 %v1628
  %1780 = vmatprep.subr.bf16.mxu0 0
  %1781 = vmatpush1.bf16.msra.mxu0 %v1629
  %1782 = vmatprep.subr.bf16.mxu0 0
  %1783 = vmatpush1.bf16.msra.mxu0 %v1630
  %1784 = vmatprep.subr.bf16.mxu0 0
  %1785 = vmatpush1.bf16.msra.mxu0 %v1631
  %1786 = vmatprep.subr.bf16.mxu0 0
  %1787 = vmatpush1.bf16.msra.mxu0 %v1632
  %1788 = vmatprep.subr.bf16.mxu0 0
  %1789 = vmatpush1.bf16.msra.mxu0 %v1633
  %1790 = vmatprep.subr.bf16.mxu0 0
  %1791 = vmatpush1.bf16.msra.mxu0 %v1634
  %1792 = vmatprep.subr.bf16.mxu0 0
  %1793 = vmatpush1.bf16.msra.mxu0 %v1635
  %1794 = vmatprep.subr.bf16.mxu0 0
  %1795 = vmatpush1.bf16.msra.mxu0 %v1636
  %1796 = vmatprep.subr.bf16.mxu0 0
  %1797 = vmatpush1.bf16.msra.mxu0 %v1637
  %1798 = vmatprep.mubr.bf16.mxu0 %v1428
  %1799 = vmatmul.mubr.bf16.gmra.mrb[0].mxu0 %v1427
  %v1800 = vpop.f32.mrb[0].mxu0
  %v1801 = vadd.f32 0.0, %v1800
  %v1802 = vpop.f32.mrb[0].mxu0
  %v1803 = vpop.f32.mrb[0].mxu0
  %v1804 = vpop.f32.mrb[0].mxu0
  %1805 = vdwg.mxu0
  %1806 = vmatprep.subr.bf16.mxu0 0
  %1807 = vmatpush1.bf16.msra.mxu0 %v1638
  %1808 = vmatprep.subr.bf16.mxu0 0
  %1809 = vmatpush1.bf16.msra.mxu0 %v1639
  %1810 = vmatprep.subr.bf16.mxu0 0
  %1811 = vmatpush1.bf16.msra.mxu0 %v1640
  %1812 = vmatprep.subr.bf16.mxu0 0
  %1813 = vmatpush1.bf16.msra.mxu0 %v1641
  %1814 = vmatprep.subr.bf16.mxu0 0
  %1815 = vmatpush1.bf16.msra.mxu0 %v1642
  %1816 = vmatprep.subr.bf16.mxu0 0
  %1817 = vmatpush1.bf16.msra.mxu0 %v1643
  %1818 = vmatprep.subr.bf16.mxu0 0
  %1819 = vmatpush1.bf16.msra.mxu0 %v1644
  %1820 = vmatprep.subr.bf16.mxu0 0
  %1821 = vmatpush1.bf16.msra.mxu0 %v1645
  %1822 = vmatprep.subr.bf16.mxu0 0
  %1823 = vmatpush1.bf16.msra.mxu0 %v1646
  %1824 = vmatprep.subr.bf16.mxu0 0
  %1825 = vmatpush1.bf16.msra.mxu0 %v1647
  %1826 = vmatprep.subr.bf16.mxu0 0
  %1827 = vmatpush1.bf16.msra.mxu0 %v1648
  %1828 = vmatprep.subr.bf16.mxu0 0
  %1829 = vmatpush1.bf16.msra.mxu0 %v1649
  %1830 = vmatprep.subr.bf16.mxu0 0
  %1831 = vmatpush1.bf16.msra.mxu0 %v1650
  %1832 = vmatprep.subr.bf16.mxu0 0
  %1833 = vmatpush1.bf16.msra.mxu0 %v1651
  %1834 = vmatprep.subr.bf16.mxu0 0
  %1835 = vmatpush1.bf16.msra.mxu0 %v1652
  %1836 = vmatprep.subr.bf16.mxu0 0
  %1837 = vmatpush1.bf16.msra.mxu0 %v1653
  %1838 = vmatprep.mubr.bf16.mxu0 0
  %1839 = vmatmul.mubr.bf16.gmra.mrb[0].mxu0 %v1429
  %v1840 = vpop.f32.mrb[0].mxu0
  %v1841 = vadd.f32 %v1801, %v1840
  %v1842 = vpop.f32.mrb[0].mxu0
  %v1843 = vpop.f32.mrb[0].mxu0
  %v1844 = vpop.f32.mrb[0].mxu0
  %1845 = vdwg.mxu0
  %v1846 = vsel %vm1301, %v1761, 0.0
  %v1847 = vrot.slane %v1846, 4
  %v1848 = vadd.f32 %v1846, %v1847
  %v1849 = vrot.slane %v1848, 2
  %v1850 = vadd.f32 %v1848, %v1849
  %v1851 = vrot.slane %v1850, 1
  %v1852 = vadd.f32 %v1850, %v1851
  %v1853 = vadd.f32 %v1852, 0.0
  %v1854 = vmul.f32 %v1761, %v1761
  %v1855 = vsel %vm1301, %v1854, 0.0
  %v1856 = vrot.slane %v1855, 4
  %v1857 = vadd.f32 %v1855, %v1856
  %v1858 = vrot.slane %v1857, 2
  %v1859 = vadd.f32 %v1857, %v1858
  %v1860 = vrot.slane %v1859, 1
  %v1861 = vadd.f32 %v1859, %v1860
  %v1862 = vadd.f32 %v1861, 0.0
  %v1863 = vsel %vm1301, %v1841, 0.0
  %v1864 = vrot.slane %v1863, 4
  %v1865 = vadd.f32 %v1863, %v1864
  %v1866 = vrot.slane %v1865, 2
  %v1867 = vadd.f32 %v1865, %v1866
  %v1868 = vrot.slane %v1867, 1
  %v1869 = vadd.f32 %v1867, %v1868
  %v1870 = vadd.f32 %v1853, %v1869
  %v1871 = vmul.f32 %v1841, %v1841
  %v1872 = vsel %vm1301, %v1871, 0.0
  %v1873 = vrot.slane %v1872, 4
  %v1874 = vadd.f32 %v1872, %v1873
  %v1875 = vrot.slane %v1874, 2
  %v1876 = vadd.f32 %v1874, %v1875
  %v1877 = vrot.slane %v1876, 1
  %v1878 = vadd.f32 %v1876, %v1877
  %v1879 = vadd.f32 %v1862, %v1878
  %1880 = vrot.lane.b32.xlu0 %v1870, 64
  %v1881 = vpop.permute.xlu0 %1880
  %v1882 = vadd.f32 %v1870, %v1881
  %1883 = vrot.lane.b32.xlu0 %v1879, 64
  %v1884 = vpop.permute.xlu0 %1883
  %v1885 = vadd.f32 %v1879, %v1884
  %v1886 = vrcp.pop 8.0
  %v1887 = vmul.f32 %v1882, %v1886
  %v1888 = vmul.f32 %v1885, %v1886
  %v1889 = vmul.f32 %v1887, %v1887
  %v1890 = vsub.f32 %v1888, %v1889
  %v1891 = vld [vmem:[%s7] sm:$0x1]
  %v1892 = vadd.f32 %v1890, 1e-05
  %v1893 = vrsqrt.pop %v1892
  %v1894 = vmul.f32 %v1891, %v1893
  %v1895 = vld [vmem:[%s8] sm:$0x1]
  %v1896 = vmul.f32 %v1887, %v1894
  %v1897 = vsub.f32 %v1895, %v1896
  %v1899 = vlaneseq
  %v1900 = vshrl.u32 %v1899, 7
  %v1901 = vsub.s32 0, %v1900
  %v1902 = vrot.slane %v1894, %v1901
  %v1904 = vmul.f32 %v1761, %v1902
  %v1906 = vlaneseq
  %v1907 = vshrl.u32 %v1906, 7
  %v1908 = vsub.s32 0, %v1907
  %v1909 = vrot.slane %v1897, %v1908
  %v1911 = vadd.f32 %v1904, %v1909
  %v1912 = vmul.f32 %v1841, %v1902
  %v1913 = vadd.f32 %v1912, %v1909
  %vm1914 = vcmp.ge.f32.partialorder %v1911, 0.0
  %v1915 = vmul.f32 %v1911, 0.2
  %v1916 = vsel %vm1914, %v1911, %v1915
  %vm1917 = vcmp.ge.f32.partialorder %v1913, 0.0
  %v1918 = vmul.f32 %v1913, 0.2
  %v1919 = vsel %vm1917, %v1913, %v1918
  %v1920 = vpack.c.bf16 %v1916, %v1916
  %v1921 = vpack.c.bf16 %v1919, %v1919
  %v1922 = vld [vmem:[%s4] sm:$0xf]
  %v1923 = vld [vmem:[%s4 + $0x4] sm:$0xf]
  %v1924 = vld [vmem:[%s4 + $0x8] sm:$0xf]
  %v1925 = vld [vmem:[%s4 + $0xc] sm:$0xf]
  %v1926 = vld [vmem:[%s4 + $0x10] sm:$0xf]
  %v1927 = vld [vmem:[%s4 + $0x14] sm:$0xf]
  %v1928 = vld [vmem:[%s4 + $0x18] sm:$0xf]
  %v1929 = vld [vmem:[%s4 + $0x1c] sm:$0xf]
  %v1930 = vld [vmem:[%s4 + $0x20] sm:$0xf]
  %v1931 = vld [vmem:[%s4 + $0x24] sm:$0xf]
  %v1932 = vld [vmem:[%s4 + $0x28] sm:$0xf]
  %v1933 = vld [vmem:[%s4 + $0x2c] sm:$0xf]
  %v1934 = vld [vmem:[%s4 + $0x30] sm:$0xf]
  %v1935 = vld [vmem:[%s4 + $0x34] sm:$0xf]
  %v1936 = vld [vmem:[%s4 + $0x38] sm:$0xf]
  %v1937 = vld [vmem:[%s4 + $0x3c] sm:$0xf]
  %v1938 = vld [vmem:[%s4 + $0x40] sm:$0xf]
  %v1939 = vld [vmem:[%s4 + $0x44] sm:$0xf]
  %v1940 = vld [vmem:[%s4 + $0x48] sm:$0xf]
  %v1941 = vld [vmem:[%s4 + $0x4c] sm:$0xf]
  %v1942 = vld [vmem:[%s4 + $0x50] sm:$0xf]
  %v1943 = vld [vmem:[%s4 + $0x54] sm:$0xf]
  %v1944 = vld [vmem:[%s4 + $0x58] sm:$0xf]
  %v1945 = vld [vmem:[%s4 + $0x5c] sm:$0xf]
  %v1946 = vld [vmem:[%s4 + $0x60] sm:$0xf]
  %v1947 = vld [vmem:[%s4 + $0x64] sm:$0xf]
  %v1948 = vld [vmem:[%s4 + $0x68] sm:$0xf]
  %v1949 = vld [vmem:[%s4 + $0x6c] sm:$0xf]
  %v1950 = vld [vmem:[%s4 + $0x70] sm:$0xf]
  %v1951 = vld [vmem:[%s4 + $0x74] sm:$0xf]
  %v1952 = vld [vmem:[%s4 + $0x78] sm:$0xf]
  %v1953 = vld [vmem:[%s4 + $0x7c] sm:$0xf]
  %v1954 = vld [vmem:[%s4 + $0x80] sm:$0xf]
  %v1955 = vld [vmem:[%s4 + $0x84] sm:$0xf]
  %v1956 = vld [vmem:[%s4 + $0x88] sm:$0xf]
  %v1957 = vld [vmem:[%s4 + $0x8c] sm:$0xf]
  %v1958 = vld [vmem:[%s4 + $0x90] sm:$0xf]
  %v1959 = vld [vmem:[%s4 + $0x94] sm:$0xf]
  %v1960 = vld [vmem:[%s4 + $0x98] sm:$0xf]
  %v1961 = vld [vmem:[%s4 + $0x9c] sm:$0xf]
  %v1962 = vld [vmem:[%s4 + $0xa0] sm:$0xf]
  %v1963 = vld [vmem:[%s4 + $0xa4] sm:$0xf]
  %v1964 = vld [vmem:[%s4 + $0xa8] sm:$0xf]
  %v1965 = vld [vmem:[%s4 + $0xac] sm:$0xf]
  %v1966 = vld [vmem:[%s4 + $0xb0] sm:$0xf]
  %v1967 = vld [vmem:[%s4 + $0xb4] sm:$0xf]
  %v1968 = vld [vmem:[%s4 + $0xb8] sm:$0xf]
  %v1969 = vld [vmem:[%s4 + $0xbc] sm:$0xf]
  %v1970 = vld [vmem:[%s4 + $0xc0] sm:$0xf]
  %v1971 = vld [vmem:[%s4 + $0xc4] sm:$0xf]
  %v1972 = vld [vmem:[%s4 + $0xc8] sm:$0xf]
  %v1973 = vld [vmem:[%s4 + $0xcc] sm:$0xf]
  %v1974 = vld [vmem:[%s4 + $0xd0] sm:$0xf]
  %v1975 = vld [vmem:[%s4 + $0xd4] sm:$0xf]
  %v1976 = vld [vmem:[%s4 + $0xd8] sm:$0xf]
  %v1977 = vld [vmem:[%s4 + $0xdc] sm:$0xf]
  %v1978 = vld [vmem:[%s4 + $0xe0] sm:$0xf]
  %v1979 = vld [vmem:[%s4 + $0xe4] sm:$0xf]
  %v1980 = vld [vmem:[%s4 + $0xe8] sm:$0xf]
  %v1981 = vld [vmem:[%s4 + $0xec] sm:$0xf]
  %v1982 = vld [vmem:[%s4 + $0xf0] sm:$0xf]
  %v1983 = vld [vmem:[%s4 + $0xf4] sm:$0xf]
  %v1984 = vld [vmem:[%s4 + $0xf8] sm:$0xf]
  %v1985 = vld [vmem:[%s4 + $0xfc] sm:$0xf]
  %v2050 = vunpack.c.l.b16 %v1922
  %v2051 = vunpack.c.l.b16 %v1923
  %v2052 = vunpack.c.l.b16 %v1924
  %v2053 = vunpack.c.l.b16 %v1925
  %v2054 = vunpack.c.l.b16 %v1926
  %v2055 = vunpack.c.l.b16 %v1927
  %v2056 = vunpack.c.l.b16 %v1928
  %v2057 = vunpack.c.l.b16 %v1929
  %v2058 = vunpack.c.l.b16 %v1930
  %v2059 = vunpack.c.l.b16 %v1931
  %v2060 = vunpack.c.l.b16 %v1932
  %v2061 = vunpack.c.l.b16 %v1933
  %v2062 = vunpack.c.l.b16 %v1934
  %v2063 = vunpack.c.l.b16 %v1935
  %v2064 = vunpack.c.l.b16 %v1936
  %v2065 = vunpack.c.l.b16 %v1937
  %v2066 = vunpack.c.l.b16 %v1938
  %v2067 = vunpack.c.l.b16 %v1939
  %v2068 = vunpack.c.l.b16 %v1940
  %v2069 = vunpack.c.l.b16 %v1941
  %v2070 = vunpack.c.l.b16 %v1942
  %v2071 = vunpack.c.l.b16 %v1943
  %v2072 = vunpack.c.l.b16 %v1944
  %v2073 = vunpack.c.l.b16 %v1945
  %v2074 = vunpack.c.l.b16 %v1946
  %v2075 = vunpack.c.l.b16 %v1947
  %v2076 = vunpack.c.l.b16 %v1948
  %v2077 = vunpack.c.l.b16 %v1949
  %v2078 = vunpack.c.l.b16 %v1950
  %v2079 = vunpack.c.l.b16 %v1951
  %v2080 = vunpack.c.l.b16 %v1952
  %v2081 = vunpack.c.l.b16 %v1953
  %v2082 = vunpack.c.l.b16 %v1954
  %v2083 = vunpack.c.l.b16 %v1955
  %v2084 = vunpack.c.l.b16 %v1956
  %v2085 = vunpack.c.l.b16 %v1957
  %v2086 = vunpack.c.l.b16 %v1958
  %v2087 = vunpack.c.l.b16 %v1959
  %v2088 = vunpack.c.l.b16 %v1960
  %v2089 = vunpack.c.l.b16 %v1961
  %v2090 = vunpack.c.l.b16 %v1962
  %v2091 = vunpack.c.l.b16 %v1963
  %v2092 = vunpack.c.l.b16 %v1964
  %v2093 = vunpack.c.l.b16 %v1965
  %v2094 = vunpack.c.l.b16 %v1966
  %v2095 = vunpack.c.l.b16 %v1967
  %v2096 = vunpack.c.l.b16 %v1968
  %v2097 = vunpack.c.l.b16 %v1969
  %v2098 = vunpack.c.l.b16 %v1970
  %v2099 = vunpack.c.l.b16 %v1971
  %v2100 = vunpack.c.l.b16 %v1972
  %v2101 = vunpack.c.l.b16 %v1973
  %v2102 = vunpack.c.l.b16 %v1974
  %v2103 = vunpack.c.l.b16 %v1975
  %v2104 = vunpack.c.l.b16 %v1976
  %v2105 = vunpack.c.l.b16 %v1977
  %v2106 = vunpack.c.l.b16 %v1978
  %v2107 = vunpack.c.l.b16 %v1979
  %v2108 = vunpack.c.l.b16 %v1980
  %v2109 = vunpack.c.l.b16 %v1981
  %v2110 = vunpack.c.l.b16 %v1982
  %v2111 = vunpack.c.l.b16 %v1983
  %v2112 = vunpack.c.l.b16 %v1984
  %v2113 = vunpack.c.l.b16 %v1985
  %v2114 = vpack.c.b16 %v2051, %v2050
  %v2115 = vpack.c.b16 %v2053, %v2052
  %v2116 = vpack.c.b16 %v2055, %v2054
  %v2117 = vpack.c.b16 %v2057, %v2056
  %v2118 = vpack.c.b16 %v2059, %v2058
  %v2119 = vpack.c.b16 %v2061, %v2060
  %v2120 = vpack.c.b16 %v2063, %v2062
  %v2121 = vpack.c.b16 %v2065, %v2064
  %v2122 = vpack.c.b16 %v2067, %v2066
  %v2123 = vpack.c.b16 %v2069, %v2068
  %v2124 = vpack.c.b16 %v2071, %v2070
  %v2125 = vpack.c.b16 %v2073, %v2072
  %v2126 = vpack.c.b16 %v2075, %v2074
  %v2127 = vpack.c.b16 %v2077, %v2076
  %v2128 = vpack.c.b16 %v2079, %v2078
  %v2129 = vpack.c.b16 %v2081, %v2080
  %v2130 = vpack.c.b16 %v2083, %v2082
  %v2131 = vpack.c.b16 %v2085, %v2084
  %v2132 = vpack.c.b16 %v2087, %v2086
  %v2133 = vpack.c.b16 %v2089, %v2088
  %v2134 = vpack.c.b16 %v2091, %v2090
  %v2135 = vpack.c.b16 %v2093, %v2092
  %v2136 = vpack.c.b16 %v2095, %v2094
  %v2137 = vpack.c.b16 %v2097, %v2096
  %v2138 = vpack.c.b16 %v2099, %v2098
  %v2139 = vpack.c.b16 %v2101, %v2100
  %v2140 = vpack.c.b16 %v2103, %v2102
  %v2141 = vpack.c.b16 %v2105, %v2104
  %v2142 = vpack.c.b16 %v2107, %v2106
  %v2143 = vpack.c.b16 %v2109, %v2108
  %v2144 = vpack.c.b16 %v2111, %v2110
  %v2145 = vpack.c.b16 %v2113, %v2112
  %2178 = vmatprep.subr.bf16.mxu0 0
  %2179 = vmatpush1.bf16.msra.mxu0 %v2114
  %2180 = vmatprep.subr.bf16.mxu0 0
  %2181 = vmatpush1.bf16.msra.mxu0 %v2115
  %2182 = vmatprep.subr.bf16.mxu0 0
  %2183 = vmatpush1.bf16.msra.mxu0 %v2116
  %2184 = vmatprep.subr.bf16.mxu0 0
  %2185 = vmatpush1.bf16.msra.mxu0 %v2117
  %2186 = vmatprep.subr.bf16.mxu0 0
  %2187 = vmatpush1.bf16.msra.mxu0 %v2118
  %2188 = vmatprep.subr.bf16.mxu0 0
  %2189 = vmatpush1.bf16.msra.mxu0 %v2119
  %2190 = vmatprep.subr.bf16.mxu0 0
  %2191 = vmatpush1.bf16.msra.mxu0 %v2120
  %2192 = vmatprep.subr.bf16.mxu0 0
  %2193 = vmatpush1.bf16.msra.mxu0 %v2121
  %2194 = vmatprep.subr.bf16.mxu0 0
  %2195 = vmatpush1.bf16.msra.mxu0 %v2122
  %2196 = vmatprep.subr.bf16.mxu0 0
  %2197 = vmatpush1.bf16.msra.mxu0 %v2123
  %2198 = vmatprep.subr.bf16.mxu0 0
  %2199 = vmatpush1.bf16.msra.mxu0 %v2124
  %2200 = vmatprep.subr.bf16.mxu0 0
  %2201 = vmatpush1.bf16.msra.mxu0 %v2125
  %2202 = vmatprep.subr.bf16.mxu0 0
  %2203 = vmatpush1.bf16.msra.mxu0 %v2126
  %2204 = vmatprep.subr.bf16.mxu0 0
  %2205 = vmatpush1.bf16.msra.mxu0 %v2127
  %2206 = vmatprep.subr.bf16.mxu0 0
  %2207 = vmatpush1.bf16.msra.mxu0 %v2128
  %2208 = vmatprep.subr.bf16.mxu0 0
  %2209 = vmatpush1.bf16.msra.mxu0 %v2129
  %2210 = vmatprep.mubr.bf16.mxu0 %v1920
  %2211 = vmatmul.mubr.bf16.gmra.mrb[0].mxu0 0
  %v2212 = vpop.f32.mrb[0].mxu0
  %v2213 = vadd.f32 0.0, %v2212
  %v2214 = vpop.f32.mrb[0].mxu0
  %v2215 = vpop.f32.mrb[0].mxu0
  %v2216 = vpop.f32.mrb[0].mxu0
  %2217 = vdwg.mxu0
  %2218 = vmatprep.subr.bf16.mxu0 0
  %2219 = vmatpush1.bf16.msra.mxu0 %v2130
  %2220 = vmatprep.subr.bf16.mxu0 0
  %2221 = vmatpush1.bf16.msra.mxu0 %v2131
  %2222 = vmatprep.subr.bf16.mxu0 0
  %2223 = vmatpush1.bf16.msra.mxu0 %v2132
  %2224 = vmatprep.subr.bf16.mxu0 0
  %2225 = vmatpush1.bf16.msra.mxu0 %v2133
  %2226 = vmatprep.subr.bf16.mxu0 0
  %2227 = vmatpush1.bf16.msra.mxu0 %v2134
  %2228 = vmatprep.subr.bf16.mxu0 0
  %2229 = vmatpush1.bf16.msra.mxu0 %v2135
  %2230 = vmatprep.subr.bf16.mxu0 0
  %2231 = vmatpush1.bf16.msra.mxu0 %v2136
  %2232 = vmatprep.subr.bf16.mxu0 0
  %2233 = vmatpush1.bf16.msra.mxu0 %v2137
  %2234 = vmatprep.subr.bf16.mxu0 0
  %2235 = vmatpush1.bf16.msra.mxu0 %v2138
  %2236 = vmatprep.subr.bf16.mxu0 0
  %2237 = vmatpush1.bf16.msra.mxu0 %v2139
  %2238 = vmatprep.subr.bf16.mxu0 0
  %2239 = vmatpush1.bf16.msra.mxu0 %v2140
  %2240 = vmatprep.subr.bf16.mxu0 0
  %2241 = vmatpush1.bf16.msra.mxu0 %v2141
  %2242 = vmatprep.subr.bf16.mxu0 0
  %2243 = vmatpush1.bf16.msra.mxu0 %v2142
  %2244 = vmatprep.subr.bf16.mxu0 0
  %2245 = vmatpush1.bf16.msra.mxu0 %v2143
  %2246 = vmatprep.subr.bf16.mxu0 0
  %2247 = vmatpush1.bf16.msra.mxu0 %v2144
  %2248 = vmatprep.subr.bf16.mxu0 0
  %2249 = vmatpush1.bf16.msra.mxu0 %v2145
  %2250 = vmatprep.mubr.bf16.mxu0 0
  %2251 = vmatmul.mubr.bf16.gmra.mrb[0].mxu0 %v1921
  %v2252 = vpop.f32.mrb[0].mxu0
  %v2253 = vadd.f32 %v2213, %v2252
  %v2254 = vpop.f32.mrb[0].mxu0
  %v2255 = vpop.f32.mrb[0].mxu0
  %v2256 = vpop.f32.mrb[0].mxu0
  %2257 = vdwg.mxu0
  %v2258 = vsel %vm1301, %v2253, 0.0
  %v2259 = vrot.slane %v2258, 4
  %v2260 = vadd.f32 %v2258, %v2259
  %v2261 = vrot.slane %v2260, 2
  %v2262 = vadd.f32 %v2260, %v2261
  %v2263 = vrot.slane %v2262, 1
  %v2264 = vadd.f32 %v2262, %v2263
  %v2265 = vadd.f32 %v2264, 0.0
  %v2266 = vmul.f32 %v2253, %v2253
  %v2267 = vsel %vm1301, %v2266, 0.0
  %v2268 = vrot.slane %v2267, 4
  %v2269 = vadd.f32 %v2267, %v2268
  %v2270 = vrot.slane %v2269, 2
  %v2271 = vadd.f32 %v2269, %v2270
  %v2272 = vrot.slane %v2271, 1
  %v2273 = vadd.f32 %v2271, %v2272
  %v2274 = vadd.f32 %v2273, 0.0
  %v2275 = vrcp.pop 2.0
  %v2276 = vmul.f32 %v2265, %v2275
  %v2277 = vmul.f32 %v2274, %v2275
  %v2278 = vmul.f32 %v2276, %v2276
  %v2279 = vsub.f32 %v2277, %v2278
  %v2280 = vld [vmem:[%s9] sm:$0x1]
  %v2281 = vadd.f32 %v2279, 1e-05
  %v2282 = vrsqrt.pop %v2281
  %v2283 = vmul.f32 %v2280, %v2282
  %v2284 = vld [vmem:[%s10] sm:$0x1]
  %v2285 = vmul.f32 %v2276, %v2283
  %v2286 = vsub.f32 %v2284, %v2285
  %v2288 = vlaneseq
  %v2289 = vshrl.u32 %v2288, 7
  %v2290 = vsub.s32 0, %v2289
  %v2291 = vrot.slane %v2283, %v2290
  %v2293 = vmul.f32 %v2253, %v2291
  %v2295 = vlaneseq
  %v2296 = vshrl.u32 %v2295, 7
  %v2297 = vsub.s32 0, %v2296
  %v2298 = vrot.slane %v2286, %v2297
  %v2300 = vadd.f32 %v2293, %v2298
  %vm2301 = vcmp.ge.f32.partialorder %v2300, 0.0
  %v2302 = vmul.f32 %v2300, 0.2
  %v2303 = vsel %vm2301, %v2300, %v2302
  %v2304 = vld [vmem:[%s11] sm:$0x1]
  %v2306 = vlaneseq
  %v2307 = vshrl.u32 %v2306, 7
  %v2308 = vsub.s32 0, %v2307
  %v2309 = vrot.slane %v2304, %v2308
  %v2311 = vmul.f32 %v2303, %v2309
  %v2312 = vsel %vm1301, %v2311, 0.0
  %2313 = vadd.xlane.f32.xlu0 %v2312
  %v2314 = vpop.xlane.xlu0 %2313
  %v2315 = vxor.u32 %v2314, 2147483648
  %v2316 = vmul.f32 %v2315, 1.442695
  %v2317 = vpow.pop %v2316
  %v2318 = vadd.f32 %v2317, 1.0
  %v2319 = vrcp.pop %v2318
  %v2320 = vmul.f32 1.0, %v2319
  %v2323 = vcombine.low %v2303, %v2320
  %v2325 = vunpack.c.l.s4 1983009808
  %v2326 = vunpack.c.0.s8 %v2325
  %v2327 = vlaneseq
  %v2328 = vshrl.u32 %v2327, 7
  %v2329 = vsub.s32 %v2326, %v2328
  %v2330 = vrot.slane %v2323, %v2329
  %2332 = vst [vmem:[%s12] sm:$0xf] %v2330
  // Predicated region
  $region50: #{discriminator_forward.1} parent=0 // pred_check
    _
  $region51: #{discriminator_forward.1} parent=0 // pred_check_branch
    %2334 = sbr.rel (0) target = $region53
  $region52: #{discriminator_forward.1} parent=0 // pred_region
    _
  $region53: #{discriminator_forward.1} parent=0 // pred_fallthru
    _
  // Predicated region
  $region54: #{discriminator_forward.1} parent=0 // pred_check
    _
  $region55: #{discriminator_forward.1} parent=0 // pred_check_branch
    %2336 = sbr.rel (0) target = $region57
  $region56: #{discriminator_forward.1} parent=0 // pred_region
    _
  $region57: #{discriminator_forward.1} parent=0 // pred_fallthru
    _

</llo_original>
